<compile_context>
chip_gen: v7x
topology: tpu7x:2x2x1
jax: 0.10.0
libtpu: 0.0.40
codegen_flags: <defaults>
</compile_context>

<pallas_src>
import jax
import jax.numpy as jnp
import numpy as np
from jax.experimental import pallas as pl
from jax.experimental.pallas import tpu as pltpu


# ----------------------------------------------------------------------------
# Hardware-aware VMEM planning
# ----------------------------------------------------------------------------
def _vmem_capacity_bytes():
    try:
        info = pltpu.get_tpu_info()
        cap = getattr(info, "vmem_capacity_bytes", None)
        if cap:
            return int(cap)
    except Exception:
        pass
    return 64 * 1024 * 1024            # conservative: v7x has 64 MiB / TC


def _vmem_plan():
    cap = _vmem_capacity_bytes()
    if cap >= 100 * 1024 * 1024:       # v5e / v6e: 128 MiB physical VMEM
        return {"budget": 80 * 1024 * 1024, "cap": 100 * 1024 * 1024}
    return {"budget": 28 * 1024 * 1024, "cap": 40 * 1024 * 1024}   # v7x


def _compiler_params(n_axes, est_vmem_bytes, limit_cap):
    kw = dict(dimension_semantics=("parallel",) * n_axes)
    est = int(est_vmem_bytes * 1.25)
    if est > 16 * 1024 * 1024:
        kw["vmem_limit_bytes"] = min(max(est, 32 * 1024 * 1024), limit_cap)
    return pltpu.CompilerParams(**kw)


def _pick_tile(total, legal, cost, budget, prefer_even_steps=False):
    """Largest divisor of `total` that is legal and fits the VMEM budget."""
    cands = [t for t in range(1, total + 1) if total % t == 0 and legal(t)]
    feas = [t for t in cands if cost(t) <= budget] or [min(cands)]
    best = max(feas)
    if prefer_even_steps and (total // best) % 2 == 1:
        even = [t for t in feas if (total // t) % 2 == 0 and 2 * t >= best]
        if even:
            best = max(even)
    return best


# ----------------------------------------------------------------------------
# Conv2d(C, C, 3, stride=2, padding=1) kernel
# ----------------------------------------------------------------------------
def _conv_downsample_kernel(xm_ref, xa_ref, w_ref, b_ref, cm_ref, o_ref):
    """3x3 / stride-2 / pad-1 conv via 6 accumulating MXU matmuls (+2 halo).

    Layout (free reshapes in the wrapper; no spatial or channel padding in HBM):
        x5[n, hh, s, p*C + c] = x_nhwc[n, hh, 2*s + p, c]
    Output pixel (r, s) reads rows {2r-1, 2r, 2r+1} x cols {2s-1, 2s, 2s+1}.
    Row slabs R1[r] = x5[2r], R2[r] = x5[2r+1]; the kh=0 slab is R2 shifted
    one output row down.  Per row slab, kw=1/kw=2 taps are the parity-0/1
    lanes at half-col s (one K=2C matmul) and the kw=0 tap is the parity-1
    lane at half-col s-1 (same matmul with zeroed parity-0 weight rows, then
    a +1 output-col shift).  Zero fill of the shifts == padding=1 top/left
    border; the tile's first output row takes its kh=0 taps from the halo.

    xm_ref: (1, 2*Th, Wo, 2C)   input rows [2*r0, 2*r0 + 2*Th)
    xa_ref: (1, 2,    Wo, 2C)   input rows [2*r0 - 2, 2*r0)  (clamped at t=0)
    w_ref : (6, 2C, C)          tap matrices [A1, A2, A0, B1, B2, B0]
    b_ref : (1, C)              float32 bias
    cm_ref: (Th*Wo, 1)          0 where the output column is 0, else 1
    o_ref : (1, Th*Wo, C)
    """
    t = pl.program_id(1)
    _, two_th, wo, c2 = xm_ref.shape
    th = two_th // 2
    c = c2 // 2
    m = th * wo

    xp = xm_ref[0].reshape(th, 2, wo, c2)
    r1 = xp[:, 0].reshape(m, c2)          # original rows 2r   (kh = 1 taps)
    r2 = xp[:, 1].reshape(m, c2)          # original rows 2r+1 (kh = 2 taps)
    ha = xa_ref[0, 1]                     # original row 2r0-1 (previous tile)

    def mm(a, i):
        return jnp.dot(a, w_ref[i], preferred_element_type=jnp.float32)

    yn = mm(r1, 0) + mm(r2, 1)     # kh=1,2  kw=1,2 : no shift
    yr = mm(r2, 2)                 # kh=0    kw=1,2 : +1 output-row shift
    yc = mm(r1, 3) + mm(r2, 4)     # kh=1,2  kw=0   : +1 output-col shift
    yrc = mm(r2, 5)                # kh=0    kw=0   : row + col shift

    # kh=0 contribution to the tile's first output row comes from the last
    # input row of the previous tile (zero for the image's first tile).
    hr = jnp.where(t > 0, mm(ha, 2), 0.0)
    hrc = jnp.where(t > 0, mm(ha, 5), 0.0)

    # +1 output-row shift == shift by `wo` flattened rows.
    if m > wo:
        yr_s = jnp.concatenate([hr, yr[:m - wo]], axis=0)
        yrc_s = jnp.concatenate([hrc, yrc[:m - wo]], axis=0)
    else:
        yr_s, yrc_s = hr, hrc

    # +1 output-col shift == shift by one flattened row; cm_ref zeroes the
    # rows whose output column is 0 (the padding=1 left border).
    ycs = yc + yrc_s
    if m > 1:
        ycs = jnp.concatenate(
            [jnp.zeros((1, c), jnp.float32), ycs[:m - 1]], axis=0)
    else:
        ycs = jnp.zeros_like(ycs)
    ycs = ycs * cm_ref[...]

    out = yn + yr_s + ycs + b_ref[...]
    o_ref[0] = out.astype(o_ref.dtype)


def downsample_conv(x_nchw, weight_oihw, bias, *, compute_dtype=None,
                    row_tile=None, vmem_budget_bytes=None):
    """Conv2d(C, C, 3, stride=2, padding=1) — matches PyTorch semantics."""
    n, c, h, w = x_nchw.shape
    assert weight_oihw.shape == (c, c, 3, 3)
    assert bias.shape == (c,)

    ho = (h - 1) // 2 + 1
    wo = (w - 1) // 2 + 1
    cd = jnp.dtype(compute_dtype) if compute_dtype is not None else x_nchw.dtype
    out_dtype = x_nchw.dtype
    e = jnp.dtype(cd).itemsize
    eo = jnp.dtype(out_dtype).itemsize

    # --- layout glue only (no halo pad / channel pad materialised in HBM) ---
    x = jnp.transpose(x_nchw, (0, 2, 3, 1)).astype(cd)              # NHWC
    pad_h, pad_w = 2 * ho - h, 2 * wo - w                           # 0 or 1
    if pad_h or pad_w:
        x = jnp.pad(x, ((0, 0), (0, pad_h), (0, pad_w), (0, 0)))
    x5 = x.reshape(n, 2 * ho, wo, 2 * c)   # free: width parity folded to lanes

    # torch weight (co, ci, kh, kw) -> six (2C, C) tap matrices.
    wt = jnp.transpose(weight_oihw, (1, 0, 2, 3))                   # (ci, co, ...)
    zero = jnp.zeros((c, c), wt.dtype)

    def w_a(kh):       # kw=1 taps in rows [0,C), kw=2 taps in rows [C,2C)
        return jnp.concatenate([wt[:, :, kh, 1], wt[:, :, kh, 2]], axis=0)

    def w_b(kh):       # kw=0 taps in rows [C,2C) (parity-1 lanes), else zero
        return jnp.concatenate([zero, wt[:, :, kh, 0]], axis=0)

    wk = jnp.stack([w_a(1), w_a(2), w_a(0), w_b(1), w_b(2), w_b(0)],
                   axis=0).astype(cd)                               # (6, 2C, C)
    bk = bias.astype(jnp.float32).reshape(1, c)

    # --- tile choice (generation-aware VMEM budget) --------------------------
    plan = _vmem_plan()
    budget = plan["budget"] if vmem_budget_bytes is None else vmem_budget_bytes
    row_div = 8 * (4 // min(e, eo, 4))     # 8 rows for 32-bit, 16 for 16-bit

    def legal(t):
        return t == ho or (t * wo) % row_div == 0

    def cost(t):
        m = t * wo
        in_main = 2 * (2 * t) * wo * 2 * c * e          # double-buffered
        in_halo = 2 * 2 * wo * 2 * c * e
        wgt = 2 * 6 * 2 * c * c * e                     # weight, 2 buffers
        out_b = 2 * m * c * eo
        tmp = 4 * m * c * e + 8 * m * c * 4             # slabs + f32 partials
        return in_main + in_halo + wgt + out_b + tmp + 2 * m * 4

    if row_tile is None:
        th = _pick_tile(ho, legal, cost, budget,
                        prefer_even_steps=(n % 2 == 1))
    else:
        assert ho % row_tile == 0 and legal(row_tile), "illegal row_tile"
        th = row_tile
    nt = ho // th
    m = th * wo

    # column-0 mask: zeroes the +1-col-shifted partial on the left border.
    cm = np.ones((m, 1), np.float32)
    cm[0::wo] = 0.0
    cm = jnp.asarray(cm)

    grid_spec = pltpu.PrefetchScalarGridSpec(
        num_scalar_prefetch=0,
        grid=(n, nt),
        in_specs=[
            # main slab: the 2*Th input rows owned by this tile
            pl.BlockSpec((1, 2 * th, wo, 2 * c), lambda b, t: (b, t, 0, 0)),
            # halo: the input-row pair just above the tile (clamped at t == 0)
            pl.BlockSpec((1, 2, wo, 2 * c),
                         lambda b, t: (b, jnp.maximum(t * th - 1, 0), 0, 0)),
            pl.BlockSpec((6, 2 * c, c), lambda b, t: (0, 0, 0)),
            pl.BlockSpec((1, c), lambda b, t: (0, 0)),
            pl.BlockSpec((m, 1), lambda b, t: (0, 0)),
        ],
        out_specs=pl.BlockSpec((1, m, c), lambda b, t: (b, t, 0)),
    )

    out = pl.pallas_call(
        _conv_downsample_kernel,
        out_shape=jax.ShapeDtypeStruct((n, ho * wo, c), out_dtype),
        grid_spec=grid_spec,
        compiler_params=_compiler_params(2, cost(th), plan["cap"]),
    )(x5, x5, wk, bk, cm)

    out = out.reshape(n, ho, wo, c)
    return jnp.transpose(out, (0, 3, 1, 2))              # back to NCHW


# ----------------------------------------------------------------------------
# AvgPool2d(2, 2) kernel (directly on NCHW, no transposes)
# ----------------------------------------------------------------------------
def _avgpool_downsample_kernel(x_ref, p_ref, o_ref):
    """2x2 / stride-2 average pool on row-pair-merged NCHW rows.

    x_ref: (TR, 2*We)  row q = [ x[n,c,2i, :We] | x[n,c,2i+1, :We] ]
    p_ref: (We, Wo)    0.25-valued pooling matrix (horizontal pair-sum / 4)
    o_ref: (TR, Wo)
    """
    we = p_ref.shape[0]
    x = x_ref[...]
    s = x[:, :we] + x[:, we:]                   # vertical pair sum, input dtype
    o_ref[...] = jnp.dot(s, p_ref[...],
                         preferred_element_type=jnp.float32).astype(o_ref.dtype)


def downsample_avgpool(x_nchw, *, row_tile=None, vmem_budget_bytes=None):
    """AvgPool2d(kernel_size=2, stride=2) — matches PyTorch semantics."""
    n, c, h, w = x_nchw.shape
    ho, wo = h // 2, w // 2
    assert ho >= 1 and wo >= 1
    we = 2 * wo
    dt = x_nchw.dtype
    e = jnp.dtype(dt).itemsize

    x = x_nchw
    if (h != 2 * ho) or (w != 2 * wo):
        x = x[:, :, :2 * ho, :2 * wo]            # floor crop for odd H / W
    # free reshape: one output row <- its two input rows, concatenated.
    xp = x.reshape(n * c * ho, 2 * we)

    # 0.25-valued pooling matrix: sums column pairs and divides by 4.
    pm = (0.25 * (np.arange(we)[:, None] // 2 ==
                  np.arange(wo)[None, :])).astype(np.float32)
    pm = jnp.asarray(pm, dtype=dt)

    rows = n * c * ho
    plan = _vmem_plan()
    budget = plan["budget"] if vmem_budget_bytes is None else vmem_budget_bytes
    row_div = 8 * (4 // min(e, 4))

    def legal(t):
        return t == rows or t % row_div == 0

    def cost(t):
        return (2 * t * 2 * we * e               # input, double-buffered
                + 2 * t * wo * e                 # output, double-buffered
                + 2 * we * wo * e                # pooling matrix
                + t * we * e + t * wo * 4)       # in-kernel temporaries

    if row_tile is None:
        tr = _pick_tile(rows, legal, cost, budget, prefer_even_steps=True)
    else:
        assert rows % row_tile == 0 and legal(row_tile), "illegal row_tile"
        tr = row_tile
    nt = rows // tr

    out = pl.pallas_call(
        _avgpool_downsample_kernel,
        out_shape=jax.ShapeDtypeStruct((rows, wo), dt),
        grid_spec=pltpu.PrefetchScalarGridSpec(
            num_scalar_prefetch=0,
            grid=(nt,),
            in_specs=[pl.BlockSpec((tr, 2 * we), lambda t: (t, 0)),
                      pl.BlockSpec((we, wo), lambda t: (0, 0))],
            out_specs=pl.BlockSpec((tr, wo), lambda t: (t, 0)),
        ),
        compiler_params=_compiler_params(1, cost(tr), plan["cap"]),
    )(xp, pm)

    return out.reshape(n, c, ho, wo)


def downsample_forward(x_nchw, params, use_conv=True, compute_dtype=None):
    """Equivalent of Downsample(channels, use_conv, dims=2).forward(x)."""
    assert x_nchw.shape[1] == params["channels"]
    if use_conv:
        return downsample_conv(x_nchw, params["weight"], params["bias"],
                               compute_dtype=compute_dtype)
    return downsample_avgpool(x_nchw)


# ----------------------------------------------------------------------------
# Reference (plain JAX) for verification
# ----------------------------------------------------------------------------
def _ref_conv(x_nchw, weight_oihw, bias):
    y = jax.lax.conv_general_dilated(
        x_nchw, weight_oihw,
        window_strides=(2, 2),
        padding=((1, 1), (1, 1)),
        dimension_numbers=("NCHW", "OIHW", "NCHW"),
        precision=jax.lax.Precision.HIGHEST)
    return y + bias[None, :, None, None]


def _ref_avgpool(x_nchw):
    n, c, h, w = x_nchw.shape
    return x_nchw[:, :, :h // 2 * 2, :w // 2 * 2].reshape(
        n, c, h // 2, 2, w // 2, 2).mean(axis=(3, 5))


# ----------------------------------------------------------------------------
if __name__ == "__main__":
    key = jax.random.PRNGKey(0)
    k_x, k_w, k_b = jax.random.split(key, 3)

    N, C, H, W = 2, 4, 16, 16
    x = jax.random.normal(k_x, (N, C, H, W), dtype=jnp.float32)

    # Deterministic synthetic parameters (Conv2d(C, C, 3) shapes).
    fan_in = C * 3 * 3
    bound = 1.0 / np.sqrt(fan_in)
    weight = jax.random.uniform(k_w, (C, C, 3, 3), jnp.float32, -bound, bound)
    bias = jax.random.uniform(k_b, (C,), jnp.float32, -bound, bound)
    params = {"channels": C, "weight": weight, "bias": bias}

    y_ref = _ref_conv(x, weight, bias)

    # use_conv=True, f32 compute, default (whole-image) row tile.
    y_conv = downsample_forward(x, params, use_conv=True)
    jax.block_until_ready(y_conv)
    assert y_conv.shape == (N, C, H // 2, W // 2)
    np.testing.assert_allclose(np.asarray(y_conv), np.asarray(y_ref),
                               rtol=1e-3, atol=1e-3)

    # Forced row tiling: exercises the halo / shifted-partial path (t > 0).
    y_tiled = downsample_conv(x, weight, bias, row_tile=2)
    jax.block_until_ready(y_tiled)
    np.testing.assert_allclose(np.asarray(y_tiled), np.asarray(y_ref),
                               rtol=1e-3, atol=1e-3)

    # bf16 compute path (v6e/v7x recommendation: halved HBM bytes, bf16 MXU,
    # f32 accumulation).  Looser tolerance: inputs are rounded to bf16.
    y_bf16 = downsample_forward(x, params, use_conv=True,
                                compute_dtype=jnp.bfloat16)
    jax.block_until_ready(y_bf16)
    np.testing.assert_allclose(np.asarray(y_bf16), np.asarray(y_ref),
                               rtol=5e-2, atol=1e-1)

    # use_conv=False path (default tile and a forced smaller tile).
    y_pool_ref = _ref_avgpool(x)
    y_pool = downsample_forward(x, params, use_conv=False)
    jax.block_until_ready(y_pool)
    assert y_pool.shape == (N, C, H // 2, W // 2)
    np.testing.assert_allclose(np.asarray(y_pool), np.asarray(y_pool_ref),
                               rtol=1e-4, atol=1e-4)

    y_pool_t = downsample_avgpool(x, row_tile=16)
    jax.block_until_ready(y_pool_t)
    np.testing.assert_allclose(np.asarray(y_pool_t), np.asarray(y_pool_ref),
                               rtol=1e-4, atol=1e-4)

    print("KERNEL_OK")
</pallas_src>

<mosaic_0001>
module attributes {stable_mosaic.version = 11 : i64} {
  func.func @_conv_downsample_kernel(%arg0: i32, %arg1: i32, %arg2: memref<1x16x8x8xf32, #tpu.memory_space<vmem>>, %arg3: memref<1x2x8x8xf32, #tpu.memory_space<vmem>>, %arg4: memref<6x8x4xf32, #tpu.memory_space<vmem>>, %arg5: memref<1x4xf32, #tpu.memory_space<vmem>>, %arg6: memref<64x1xf32, #tpu.memory_space<vmem>>, %arg7: memref<1x64x4xf32, #tpu.memory_space<vmem>>) attributes {dimension_semantics = [#tpu.dimension_semantics<parallel>, #tpu.dimension_semantics<parallel>], iteration_bounds = array<i64: 2, 1>, scalar_prefetch = 0 : i64, scratch_operands = 0 : i64, tpu.core_type = #tpu.core_type<tc>, window_params = [{transform_indices = @transform_0, window_bounds = array<i64: 1, 16, 8, 8>}, {transform_indices = @transform_1, window_bounds = array<i64: 1, 2, 8, 8>}, {pipeline_mode = #tpu.pipeline_mode<synchronous>, transform_indices = @transform_2, window_bounds = array<i64: 6, 8, 4>}, {pipeline_mode = #tpu.pipeline_mode<synchronous>, transform_indices = @transform_3, window_bounds = array<i64: 1, 4>}, {pipeline_mode = #tpu.pipeline_mode<synchronous>, transform_indices = @transform_4, window_bounds = array<i64: 64, 1>}, {transform_indices = @transform_5, window_bounds = array<i64: 1, 64, 4>}]} {
    %c0 = arith.constant 0 : index
    %c0_0 = arith.constant 0 : index
    %c0_1 = arith.constant 0 : index
    %c0_2 = arith.constant 0 : index
    %0 = vector.load %arg2[%c0, %c0_0, %c0_1, %c0_2] : memref<1x16x8x8xf32, #tpu.memory_space<vmem>>, vector<1x16x8x8xf32>
    %1 = vector.shape_cast %0 : vector<1x16x8x8xf32> to vector<16x8x8xf32>
    %2 = vector.shape_cast %1 : vector<16x8x8xf32> to vector<8x2x8x8xf32>
    %3 = vector.extract_strided_slice %2 {offsets = [0, 0, 0, 0], sizes = [8, 1, 8, 8], strides = [1, 1, 1, 1]} : vector<8x2x8x8xf32> to vector<8x1x8x8xf32>
    %4 = vector.shape_cast %3 : vector<8x1x8x8xf32> to vector<8x8x8xf32>
    %5 = vector.shape_cast %4 : vector<8x8x8xf32> to vector<64x8xf32>
    %6 = vector.extract_strided_slice %2 {offsets = [0, 1, 0, 0], sizes = [8, 1, 8, 8], strides = [1, 1, 1, 1]} : vector<8x2x8x8xf32> to vector<8x1x8x8xf32>
    %7 = vector.shape_cast %6 : vector<8x1x8x8xf32> to vector<8x8x8xf32>
    %8 = vector.shape_cast %7 : vector<8x8x8xf32> to vector<64x8xf32>
    %c0_3 = arith.constant 0 : index
    %c1 = arith.constant 1 : index
    %c0_4 = arith.constant 0 : index
    %c0_5 = arith.constant 0 : index
    %9 = vector.load %arg3[%c0_3, %c1, %c0_4, %c0_5] : memref<1x2x8x8xf32, #tpu.memory_space<vmem>>, vector<1x1x8x8xf32>
    %10 = vector.shape_cast %9 : vector<1x1x8x8xf32> to vector<8x8xf32>
    %c0_6 = arith.constant 0 : index
    %c0_7 = arith.constant 0 : index
    %c0_8 = arith.constant 0 : index
    %11 = vector.load %arg4[%c0_6, %c0_7, %c0_8] : memref<6x8x4xf32, #tpu.memory_space<vmem>>, vector<1x8x4xf32>
    %12 = vector.shape_cast %11 : vector<1x8x4xf32> to vector<8x4xf32>
    %cst = arith.constant dense<0.000000e+00> : vector<64x4xf32>
    %13 = tpu.matmul %5, %12, %cst {dimension_numbers = #tpu.dot_dimension_numbers<[1], [0], [0], [1], [0, 0, 1, 1], [], []>} : vector<64x8xf32>, vector<8x4xf32>, vector<64x4xf32> -> vector<64x4xf32>
    %c1_9 = arith.constant 1 : index
    %c0_10 = arith.constant 0 : index
    %c0_11 = arith.constant 0 : index
    %14 = vector.load %arg4[%c1_9, %c0_10, %c0_11] : memref<6x8x4xf32, #tpu.memory_space<vmem>>, vector<1x8x4xf32>
    %15 = vector.shape_cast %14 : vector<1x8x4xf32> to vector<8x4xf32>
    %cst_12 = arith.constant dense<0.000000e+00> : vector<64x4xf32>
    %16 = tpu.matmul %8, %15, %cst_12 {dimension_numbers = #tpu.dot_dimension_numbers<[1], [0], [0], [1], [0, 0, 1, 1], [], []>} : vector<64x8xf32>, vector<8x4xf32>, vector<64x4xf32> -> vector<64x4xf32>
    %17 = arith.addf %13, %16 : vector<64x4xf32>
    %c2 = arith.constant 2 : index
    %c0_13 = arith.constant 0 : index
    %c0_14 = arith.constant 0 : index
    %18 = vector.load %arg4[%c2, %c0_13, %c0_14] : memref<6x8x4xf32, #tpu.memory_space<vmem>>, vector<1x8x4xf32>
    %19 = vector.shape_cast %18 : vector<1x8x4xf32> to vector<8x4xf32>
    %cst_15 = arith.constant dense<0.000000e+00> : vector<64x4xf32>
    %20 = tpu.matmul %8, %19, %cst_15 {dimension_numbers = #tpu.dot_dimension_numbers<[1], [0], [0], [1], [0, 0, 1, 1], [], []>} : vector<64x8xf32>, vector<8x4xf32>, vector<64x4xf32> -> vector<64x4xf32>
    %c3 = arith.constant 3 : index
    %c0_16 = arith.constant 0 : index
    %c0_17 = arith.constant 0 : index
    %21 = vector.load %arg4[%c3, %c0_16, %c0_17] : memref<6x8x4xf32, #tpu.memory_space<vmem>>, vector<1x8x4xf32>
    %22 = vector.shape_cast %21 : vector<1x8x4xf32> to vector<8x4xf32>
    %cst_18 = arith.constant dense<0.000000e+00> : vector<64x4xf32>
    %23 = tpu.matmul %5, %22, %cst_18 {dimension_numbers = #tpu.dot_dimension_numbers<[1], [0], [0], [1], [0, 0, 1, 1], [], []>} : vector<64x8xf32>, vector<8x4xf32>, vector<64x4xf32> -> vector<64x4xf32>
    %c4 = arith.constant 4 : index
    %c0_19 = arith.constant 0 : index
    %c0_20 = arith.constant 0 : index
    %24 = vector.load %arg4[%c4, %c0_19, %c0_20] : memref<6x8x4xf32, #tpu.memory_space<vmem>>, vector<1x8x4xf32>
    %25 = vector.shape_cast %24 : vector<1x8x4xf32> to vector<8x4xf32>
    %cst_21 = arith.constant dense<0.000000e+00> : vector<64x4xf32>
    %26 = tpu.matmul %8, %25, %cst_21 {dimension_numbers = #tpu.dot_dimension_numbers<[1], [0], [0], [1], [0, 0, 1, 1], [], []>} : vector<64x8xf32>, vector<8x4xf32>, vector<64x4xf32> -> vector<64x4xf32>
    %27 = arith.addf %23, %26 : vector<64x4xf32>
    %c5 = arith.constant 5 : index
    %c0_22 = arith.constant 0 : index
    %c0_23 = arith.constant 0 : index
    %28 = vector.load %arg4[%c5, %c0_22, %c0_23] : memref<6x8x4xf32, #tpu.memory_space<vmem>>, vector<1x8x4xf32>
    %29 = vector.shape_cast %28 : vector<1x8x4xf32> to vector<8x4xf32>
    %cst_24 = arith.constant dense<0.000000e+00> : vector<64x4xf32>
    %30 = tpu.matmul %8, %29, %cst_24 {dimension_numbers = #tpu.dot_dimension_numbers<[1], [0], [0], [1], [0, 0, 1, 1], [], []>} : vector<64x8xf32>, vector<8x4xf32>, vector<64x4xf32> -> vector<64x4xf32>
    %c0_i32 = arith.constant 0 : i32
    %31 = arith.cmpi sgt, %arg1, %c0_i32 : i32
    %c2_25 = arith.constant 2 : index
    %c0_26 = arith.constant 0 : index
    %c0_27 = arith.constant 0 : index
    %32 = vector.load %arg4[%c2_25, %c0_26, %c0_27] : memref<6x8x4xf32, #tpu.memory_space<vmem>>, vector<1x8x4xf32>
    %33 = vector.shape_cast %32 : vector<1x8x4xf32> to vector<8x4xf32>
    %cst_28 = arith.constant dense<0.000000e+00> : vector<8x4xf32>
    %34 = tpu.matmul %10, %33, %cst_28 {dimension_numbers = #tpu.dot_dimension_numbers<[1], [0], [0], [1], [0, 0, 1, 1], [], []>} : vector<8x8xf32>, vector<8x4xf32>, vector<8x4xf32> -> vector<8x4xf32>
    %cst_29 = arith.constant 0.000000e+00 : f32
    %35 = vector.broadcast %cst_29 : f32 to vector<8x4xf32>
    %36 = arith.select %31, %34, %35 : vector<8x4xf32>
    %c0_i32_30 = arith.constant 0 : i32
    %37 = arith.cmpi sgt, %arg1, %c0_i32_30 : i32
    %c5_31 = arith.constant 5 : index
    %c0_32 = arith.constant 0 : index
    %c0_33 = arith.constant 0 : index
    %38 = vector.load %arg4[%c5_31, %c0_32, %c0_33] : memref<6x8x4xf32, #tpu.memory_space<vmem>>, vector<1x8x4xf32>
    %39 = vector.shape_cast %38 : vector<1x8x4xf32> to vector<8x4xf32>
    %cst_34 = arith.constant dense<0.000000e+00> : vector<8x4xf32>
    %40 = tpu.matmul %10, %39, %cst_34 {dimension_numbers = #tpu.dot_dimension_numbers<[1], [0], [0], [1], [0, 0, 1, 1], [], []>} : vector<8x8xf32>, vector<8x4xf32>, vector<8x4xf32> -> vector<8x4xf32>
    %cst_35 = arith.constant 0.000000e+00 : f32
    %41 = vector.broadcast %cst_35 : f32 to vector<8x4xf32>
    %42 = arith.select %37, %40, %41 : vector<8x4xf32>
    %43 = vector.extract_strided_slice %20 {offsets = [0, 0], sizes = [56, 4], strides = [1, 1]} : vector<64x4xf32> to vector<56x4xf32>
    %44 = tpu.concatenate %36, %43 in 0 : vector<8x4xf32>, vector<56x4xf32> -> vector<64x4xf32>
    %45 = vector.extract_strided_slice %30 {offsets = [0, 0], sizes = [56, 4], strides = [1, 1]} : vector<64x4xf32> to vector<56x4xf32>
    %46 = tpu.concatenate %42, %45 in 0 : vector<8x4xf32>, vector<56x4xf32> -> vector<64x4xf32>
    %47 = arith.addf %27, %46 : vector<64x4xf32>
    %cst_36 = arith.constant 0.000000e+00 : f32
    %48 = vector.broadcast %cst_36 : f32 to vector<1x4xf32>
    %49 = vector.extract_strided_slice %47 {offsets = [0, 0], sizes = [63, 4], strides = [1, 1]} : vector<64x4xf32> to vector<63x4xf32>
    %50 = tpu.concatenate %48, %49 in 0 : vector<1x4xf32>, vector<63x4xf32> -> vector<64x4xf32>
    %c0_37 = arith.constant 0 : index
    %c0_38 = arith.constant 0 : index
    %51 = vector.load %arg6[%c0_37, %c0_38] : memref<64x1xf32, #tpu.memory_space<vmem>>, vector<64x1xf32>
    %52 = vector.broadcast %51 : vector<64x1xf32> to vector<64x4xf32>
    %53 = arith.mulf %50, %52 : vector<64x4xf32>
    %54 = arith.addf %17, %44 : vector<64x4xf32>
    %55 = arith.addf %54, %53 : vector<64x4xf32>
    %c0_39 = arith.constant 0 : index
    %c0_40 = arith.constant 0 : index
    %56 = vector.load %arg5[%c0_39, %c0_40] : memref<1x4xf32, #tpu.memory_space<vmem>>, vector<1x4xf32>
    %57 = vector.broadcast %56 : vector<1x4xf32> to vector<64x4xf32>
    %58 = arith.addf %55, %57 : vector<64x4xf32>
    %c0_41 = arith.constant 0 : index
    %c0_42 = arith.constant 0 : index
    %c0_43 = arith.constant 0 : index
    %59 = vector.load %arg7[%c0_41, %c0_42, %c0_43] : memref<1x64x4xf32, #tpu.memory_space<vmem>>, vector<1x64x4xf32>
    %60 = vector.shape_cast %59 : vector<1x64x4xf32> to vector<64x4xf32>
    %61 = vector.shape_cast %58 : vector<64x4xf32> to vector<1x64x4xf32>
    tpu.vector_store %arg7[%c0_41, %c0_42, %c0_43], %61 {strides = array<i32>} : memref<1x64x4xf32, #tpu.memory_space<vmem>>, vector<1x64x4xf32>,
    return
  }
  func.func @transform_0(%arg0: i32, %arg1: i32) -> (i32, i32, i32, i32) {
    %c0_i32 = arith.constant 0 : i32
    %c0_i32_0 = arith.constant 0 : i32
    %c0_i32_1 = arith.constant 0 : i32
    return %arg0, %arg1, %c0_i32, %c0_i32_0 : i32, i32, i32, i32
  }
  func.func @transform_1(%arg0: i32, %arg1: i32) -> (i32, i32, i32, i32) {
    %c8_i32 = arith.constant 8 : i32
    %0 = arith.muli %arg1, %c8_i32 : i32
    %c1_i32 = arith.constant 1 : i32
    %1 = arith.subi %0, %c1_i32 : i32
    %c0_i32 = arith.constant 0 : i32
    %2 = arith.maxsi %1, %c0_i32 : i32
    %c0_i32_0 = arith.constant 0 : i32
    %c0_i32_1 = arith.constant 0 : i32
    %c0_i32_2 = arith.constant 0 : i32
    return %arg0, %2, %c0_i32_0, %c0_i32_1 : i32, i32, i32, i32
  }
  func.func @transform_2(%arg0: i32, %arg1: i32) -> (i32, i32, i32) {
    %c0_i32 = arith.constant 0 : i32
    %c0_i32_0 = arith.constant 0 : i32
    %c0_i32_1 = arith.constant 0 : i32
    %c0_i32_2 = arith.constant 0 : i32
    return %c0_i32, %c0_i32_0, %c0_i32_1 : i32, i32, i32
  }
  func.func @transform_3(%arg0: i32, %arg1: i32) -> (i32, i32) {
    %c0_i32 = arith.constant 0 : i32
    %c0_i32_0 = arith.constant 0 : i32
    %c0_i32_1 = arith.constant 0 : i32
    return %c0_i32, %c0_i32_0 : i32, i32
  }
  func.func @transform_4(%arg0: i32, %arg1: i32) -> (i32, i32) {
    %c0_i32 = arith.constant 0 : i32
    %c0_i32_0 = arith.constant 0 : i32
    %c0_i32_1 = arith.constant 0 : i32
    return %c0_i32, %c0_i32_0 : i32, i32
  }
  func.func @transform_5(%arg0: i32, %arg1: i32) -> (i32, i32, i32) {
    %c0_i32 = arith.constant 0 : i32
    %c0_i32_0 = arith.constant 0 : i32
    return %arg0, %arg1, %c0_i32 : i32, i32, i32
  }
}

</mosaic_0001>

<llo_original>
// kernel: tpu_custom_call.1
$region0: #{tpu_custom_call.1}
  #allocation0 [shape = 'u32[]', space=smem, size = 0x4, offset = 0x4, fixed_abs, tag = 'smem constant byte address 0x4 - core index']
  #allocation1 [shape = 'u32[144,128]{1,0:T(1,128)}', space=vmem, size = 0x12000, scoped, tag = 'internal scratch']
  %s0 = inlined_call_operand.vmem [shape: f32[2,16,8,8], index: 0, kind: input, shape index: {}]
  %s1 = inlined_call_operand.vmem [shape: f32[2,16,8,8], index: 1, kind: input, shape index: {}]
  %s2 = inlined_call_operand.vmem [shape: f32[6,8,4], index: 2, kind: input, shape index: {}]
  %s3 = inlined_call_operand.vmem [shape: f32[1,4], index: 3, kind: input, shape index: {}]
  %s4 = inlined_call_operand.vmem [shape: f32[64,1], index: 4, kind: input, shape index: {}]
  %s5 = inlined_call_operand.vmem [shape: f32[2,64,4], index: 5, kind: output, shape index: {}]
  %s6 = sld [smem:[#allocation0]]
  $region53: #{tpu_custom_call.1} parent=0
    _
  %s8 = ssub.s32 1, %s6
  %s9 = scalar_select 0, %s8, %s6
  loop: start=0, step=1, limit=4
  $region2: #{tpu_custom_call.1} parent=0 // loop_pre_header
    _
  $region3: #{tpu_custom_call.1} parent=0 // loop_header
    %s11 = sphi 0, %s15
    %p12 = scmp.ge.s32.totalorder %s11, 4
    %s18 = sphi 0, %s30
    %s19 = sphi 0, %s26
    %s20 = sphi 0, %s18
    %s21 = sphi 0, %s19
    %s22 = sphi 0, %s20
    %s23 = sphi 0, %s21
    %s35 = sphi 0, %s37
    %s38 = sphi 0, %s35
    %s39 = sphi 0, %s38
    %s55 = sphi 0, %s39
    %s71 = sphi 0, %s73
    %s74 = sphi 0, %s71
    %s75 = sphi 0, %s74
    %s91 = sphi 0, %s75
    %s95 = sphi 0, %s95
    %s97 = sphi 0, %s95
    %s98 = sphi 0, %s97
    %s112 = sphi 0, %s98
    %s116 = sphi 0, %s116
    %s118 = sphi 0, %s116
    %s119 = sphi 0, %s118
    %s133 = sphi 0, %s119
    %s137 = sphi 0, %s137
    %s139 = sphi 0, %s137
    %s140 = sphi 0, %s139
    %s154 = sphi 0, %s140
    %s162 = sphi 0, %s164
    %s165 = sphi 0, %s162
    %s166 = sphi 0, %s165
    %s182 = sphi 0, %s166
  $region4: #{tpu_custom_call.1} parent=0 // loop_header_branch
    %14 = sbr.rel (%p12) target = $region8
  $region5: #{tpu_custom_call.1} parent=0 // loop_body
    %s16 = ssub.s32 %s11, 1
    %s17 = ssub.s32 %s11, 2
    %s24 = sadd.s32 1, %s19
    %p25 = scmp.ge.s32.totalorder %s24, 1
    %s26 = scalar_select %p25, 0, %s24
    %s27 = sadd.s32 1, %s18
    %s28 = scalar_select %p25, %s27, %s18
    %p29 = scmp.ge.s32.totalorder %s28, 2
    %s30 = scalar_select %p29, 0, %s28
    %s31 = ssub.s32 %s18, %s30
    %s32 = ssub.s32 %s19, %s26
    %s33 = sor.u32 %s31, %s32
    %p34 = scmp.eq.s32.totalorder %s33, 0
    %s36 = sadd.s32 %s35, 1
    %s37 = scalar_select %p34, %s35, %s36
    %p40 = pneg %p34
    %p41 = scmp.eq.s32.totalorder %s11, 1
    %p42 = por %p40, %p41
    %p43 = scmp.ne.s32.totalorder %s35, %s38
    %p44 = scmp.eq.s32.totalorder %s11, 0
    %p45 = por %p43, %p44
    %p46 = scmp.ne.s32.totalorder %s35, %s38
    %p47 = scmp.eq.s32.totalorder %s16, 1
    %p48 = por %p46, %p47
    %p49 = scmp.ne.s32.totalorder %s38, %s39
    %p50 = scmp.eq.s32.totalorder %s16, 0
    %p51 = por %p49, %p50
    %p52 = scmp.ne.s32.totalorder %s38, %s39
    %p53 = scmp.eq.s32.totalorder %s17, 1
    %p54 = por %p52, %p53
    %p56 = scmp.ne.s32.totalorder %s39, %s55
    %p57 = scmp.eq.s32.totalorder %s17, 0
    %p58 = por %p56, %p57
    %s59 = smul.u32 %s19, 8
    %s60 = ssub.s32 %s59, 1
    %p61 = scmp.gt.s32.totalorder %s60, 0
    %s62 = scalar_select %p61, %s60, 0
    %s63 = smul.u32 %s26, 8
    %s64 = ssub.s32 %s63, 1
    %p65 = scmp.gt.s32.totalorder %s64, 0
    %s66 = scalar_select %p65, %s64, 0
    %s67 = ssub.s32 %s18, %s30
    %s68 = ssub.s32 %s62, %s66
    %s69 = sor.u32 %s67, %s68
    %p70 = scmp.eq.s32.totalorder %s69, 0
    %s72 = sadd.s32 %s71, 1
    %s73 = scalar_select %p70, %s71, %s72
    %p76 = pneg %p70
    %p77 = scmp.eq.s32.totalorder %s11, 1
    %p78 = por %p76, %p77
    %p79 = scmp.ne.s32.totalorder %s71, %s74
    %p80 = scmp.eq.s32.totalorder %s11, 0
    %p81 = por %p79, %p80
    %p82 = scmp.ne.s32.totalorder %s71, %s74
    %p83 = scmp.eq.s32.totalorder %s16, 1
    %p84 = por %p82, %p83
    %p85 = scmp.ne.s32.totalorder %s74, %s75
    %p86 = scmp.eq.s32.totalorder %s16, 0
    %p87 = por %p85, %p86
    %p88 = scmp.ne.s32.totalorder %s74, %s75
    %p89 = scmp.eq.s32.totalorder %s17, 1
    %p90 = por %p88, %p89
    %p92 = scmp.ne.s32.totalorder %s75, %s91
    %p93 = scmp.eq.s32.totalorder %s17, 0
    %p94 = por %p92, %p93
    %s96 = sadd.s32 %s95, 1
    %p99 = scmp.eq.s32.totalorder %s11, 1
    %p100 = scmp.ne.s32.totalorder %s95, %s97
    %p101 = scmp.eq.s32.totalorder %s11, 0
    %p102 = por %p100, %p101
    %p103 = scmp.ne.s32.totalorder %s95, %s97
    %p104 = scmp.eq.s32.totalorder %s16, 1
    %p105 = por %p103, %p104
    %p106 = scmp.ne.s32.totalorder %s97, %s98
    %p107 = scmp.eq.s32.totalorder %s16, 0
    %p108 = por %p106, %p107
    %p109 = scmp.ne.s32.totalorder %s97, %s98
    %p110 = scmp.eq.s32.totalorder %s17, 1
    %p111 = por %p109, %p110
    %p113 = scmp.ne.s32.totalorder %s98, %s112
    %p114 = scmp.eq.s32.totalorder %s17, 0
    %p115 = por %p113, %p114
    %s117 = sadd.s32 %s116, 1
    %p120 = scmp.eq.s32.totalorder %s11, 1
    %p121 = scmp.ne.s32.totalorder %s116, %s118
    %p122 = scmp.eq.s32.totalorder %s11, 0
    %p123 = por %p121, %p122
    %p124 = scmp.ne.s32.totalorder %s116, %s118
    %p125 = scmp.eq.s32.totalorder %s16, 1
    %p126 = por %p124, %p125
    %p127 = scmp.ne.s32.totalorder %s118, %s119
    %p128 = scmp.eq.s32.totalorder %s16, 0
    %p129 = por %p127, %p128
    %p130 = scmp.ne.s32.totalorder %s118, %s119
    %p131 = scmp.eq.s32.totalorder %s17, 1
    %p132 = por %p130, %p131
    %p134 = scmp.ne.s32.totalorder %s119, %s133
    %p135 = scmp.eq.s32.totalorder %s17, 0
    %p136 = por %p134, %p135
    %s138 = sadd.s32 %s137, 1
    %p141 = scmp.eq.s32.totalorder %s11, 1
    %p142 = scmp.ne.s32.totalorder %s137, %s139
    %p143 = scmp.eq.s32.totalorder %s11, 0
    %p144 = por %p142, %p143
    %p145 = scmp.ne.s32.totalorder %s137, %s139
    %p146 = scmp.eq.s32.totalorder %s16, 1
    %p147 = por %p145, %p146
    %p148 = scmp.ne.s32.totalorder %s139, %s140
    %p149 = scmp.eq.s32.totalorder %s16, 0
    %p150 = por %p148, %p149
    %p151 = scmp.ne.s32.totalorder %s139, %s140
    %p152 = scmp.eq.s32.totalorder %s17, 1
    %p153 = por %p151, %p152
    %p155 = scmp.ne.s32.totalorder %s140, %s154
    %p156 = scmp.eq.s32.totalorder %s17, 0
    %p157 = por %p155, %p156
    %s158 = ssub.s32 %s18, %s30
    %s159 = ssub.s32 %s19, %s26
    %s160 = sor.u32 %s158, %s159
    %p161 = scmp.eq.s32.totalorder %s160, 0
    %s163 = sadd.s32 %s162, 1
    %s164 = scalar_select %p161, %s162, %s163
    %p167 = pneg %p161
    %p168 = scmp.eq.s32.totalorder %s11, 1
    %p169 = por %p167, %p168
    %p170 = scmp.ne.s32.totalorder %s162, %s165
    %p171 = scmp.eq.s32.totalorder %s11, 0
    %p172 = por %p170, %p171
    %p173 = scmp.ne.s32.totalorder %s162, %s165
    %p174 = scmp.eq.s32.totalorder %s16, 1
    %p175 = por %p173, %p174
    %p176 = scmp.ne.s32.totalorder %s165, %s166
    %p177 = scmp.eq.s32.totalorder %s16, 0
    %p178 = por %p176, %p177
    %p179 = scmp.ne.s32.totalorder %s165, %s166
    %p180 = scmp.eq.s32.totalorder %s17, 1
    %p181 = por %p179, %p180
    %p183 = scmp.ne.s32.totalorder %s166, %s182
    %p184 = scmp.eq.s32.totalorder %s17, 0
    %p185 = por %p183, %p184
    %p186 = scmp.le.s32.totalorder 1, %s11
    %p187 = scmp.lt.s32.totalorder %s11, 3
    %p188 = pnand %p186, %p187
    %p189 = pneg %p188
    // Predicated region
    $region9: #{tpu_custom_call.1} parent=5 // pred_check
      _
    $region10: #{tpu_custom_call.1} parent=5 // pred_check_branch
      %191 = sbr.rel (%p188) target = $region12
    $region11: #{tpu_custom_call.1} parent=5 // pred_region
      %s192 = ssub.s32 %s11, 1
      // Predicated region
      $region13: #{tpu_custom_call.1} parent=11 // pred_check
        %p193 = pneg %p108
      $region14: #{tpu_custom_call.1} parent=11 // pred_check_branch
        %195 = sbr.rel (%p193) target = $region16
      $region15: #{tpu_custom_call.1} parent=11 // pred_region
        _
      $region16: #{tpu_custom_call.1} parent=11 // pred_fallthru
        _
      // Predicated region
      $region17: #{tpu_custom_call.1} parent=11 // pred_check
        %p196 = pneg %p129
      $region18: #{tpu_custom_call.1} parent=11 // pred_check_branch
        %198 = sbr.rel (%p196) target = $region20
      $region19: #{tpu_custom_call.1} parent=11 // pred_region
        _
      $region20: #{tpu_custom_call.1} parent=11 // pred_fallthru
        _
      // Predicated region
      $region21: #{tpu_custom_call.1} parent=11 // pred_check
        %p199 = pneg %p150
      $region22: #{tpu_custom_call.1} parent=11 // pred_check_branch
        %201 = sbr.rel (%p199) target = $region24
      $region23: #{tpu_custom_call.1} parent=11 // pred_region
        _
      $region24: #{tpu_custom_call.1} parent=11 // pred_fallthru
        _
    $region12: #{tpu_custom_call.1} parent=5 // pred_fallthru
      _
    %p202 = scmp.lt.s32.totalorder %s11, 2
    // Predicated region
    $region25: #{tpu_custom_call.1} parent=5 // pred_check
      %p203 = pneg %p202
    $region26: #{tpu_custom_call.1} parent=5 // pred_check_branch
      %205 = sbr.rel (%p203) target = $region28
    $region27: #{tpu_custom_call.1} parent=5 // pred_region
      // Predicated region
      $region29: #{tpu_custom_call.1} parent=27 // pred_check
        %p206 = pneg %p45
      $region30: #{tpu_custom_call.1} parent=27 // pred_check_branch
        %208 = sbr.rel (%p206) target = $region32
      $region31: #{tpu_custom_call.1} parent=27 // pred_region
        %s209 = smul.u32 16, %s19
        %p210 = scmp.lt.s32.totalorder %s18, 1
        %s211 = scalar_select %p210, %s18, 1
        %p212 = scmp.lt.s32.totalorder %s209, 15
        %s213 = scalar_select %p212, %s209, 15
        %s214 = smul.addr %s211, 16
        %s215 = sadd.s32 %s213, %s214
        %s216 = smul.addr %s215, 8
        %s217 = scalar_lea.vmem %s0, %s216
        %s218 = smul.u32 16, %s19
      $region32: #{tpu_custom_call.1} parent=27 // pred_fallthru
        _
      // Predicated region
      $region33: #{tpu_custom_call.1} parent=27 // pred_check
        %p219 = pneg %p81
      $region34: #{tpu_custom_call.1} parent=27 // pred_check_branch
        %221 = sbr.rel (%p219) target = $region36
      $region35: #{tpu_custom_call.1} parent=27 // pred_region
        %s222 = smul.u32 %s19, 8
        %s223 = ssub.s32 %s222, 1
        %p224 = scmp.gt.s32.totalorder %s223, 0
        %s225 = scalar_select %p224, %s223, 0
        %s226 = smul.u32 2, %s225
        %p227 = scmp.lt.s32.totalorder %s18, 1
        %s228 = scalar_select %p227, %s18, 1
        %p229 = scmp.lt.s32.totalorder %s226, 15
        %s230 = scalar_select %p229, %s226, 15
        %s231 = smul.addr %s228, 16
        %s232 = sadd.s32 %s230, %s231
        %s233 = smul.addr %s232, 8
        %s234 = scalar_lea.vmem %s1, %s233
        %s235 = smul.u32 %s19, 8
        %s236 = ssub.s32 %s235, 1
        %p237 = scmp.gt.s32.totalorder %s236, 0
        %s238 = scalar_select %p237, %s236, 0
        %s239 = smul.u32 2, %s238
      $region36: #{tpu_custom_call.1} parent=27 // pred_fallthru
        _
    $region28: #{tpu_custom_call.1} parent=5 // pred_fallthru
      _
    %p240 = scmp.le.s32.totalorder 1, %s11
    %p241 = scmp.lt.s32.totalorder %s11, 3
    %p242 = pnand %p240, %p241
    %p243 = pneg %p242
    // Predicated region
    $region37: #{tpu_custom_call.1} parent=5 // pred_check
      _
    $region38: #{tpu_custom_call.1} parent=5 // pred_check_branch
      %245 = sbr.rel (%p242) target = $region40
    $region39: #{tpu_custom_call.1} parent=5 // pred_region
      %s246 = ssub.s32 %s11, 1
      %s247 = smul.u32 16, %s21
      %p248 = scmp.lt.s32.totalorder %s20, 1
      %s249 = scalar_select %p248, %s20, 1
      %p250 = scmp.lt.s32.totalorder %s247, 15
      %s251 = scalar_select %p250, %s247, 15
      %s252 = smul.addr %s249, 16
      %s253 = sadd.s32 %s251, %s252
      %s254 = smul.addr %s253, 8
      %s255 = scalar_lea.vmem %s0, %s254
      %p256 = pneg %p51
      %p257 = pneg %p48
      %s258 = smul.u32 %s21, 8
      %s259 = ssub.s32 %s258, 1
      %p260 = scmp.gt.s32.totalorder %s259, 0
      %s261 = scalar_select %p260, %s259, 0
      %s262 = smul.u32 2, %s261
      %p263 = scmp.lt.s32.totalorder %s20, 1
      %s264 = scalar_select %p263, %s20, 1
      %p265 = scmp.lt.s32.totalorder %s262, 15
      %s266 = scalar_select %p265, %s262, 15
      %s267 = smul.addr %s264, 16
      %s268 = sadd.s32 %s266, %s267
      %s269 = smul.addr %s268, 8
      %s270 = scalar_lea.vmem %s1, %s269
      %p271 = pneg %p87
      %p272 = pneg %p84
      %p273 = pneg %p108
      %p274 = pneg %p105
      %p275 = pneg %p129
      %p276 = pneg %p126
      %p277 = pneg %p150
      %p278 = pneg %p147
      %p279 = pneg %p178
      %p280 = pneg %p175
      %s281 = smul.u32 8, %s21
      %p282 = scmp.lt.s32.totalorder %s20, 1
      %s283 = scalar_select %p282, %s20, 1
      %p284 = scmp.lt.s32.totalorder %s281, 7
      %s285 = scalar_select %p284, %s281, 7
      %s286 = smul.addr %s283, 8
      %s287 = sadd.s32 %s285, %s286
      %s288 = smul.addr %s287, 8
      %s289 = scalar_lea.vmem %s5, %s288
      %s290 = smul.u32 16, %s21
      %p291 = scmp.lt.s32.totalorder %s20, 1
      %s292 = scalar_select %p291, %s20, 1
      %p293 = scmp.lt.s32.totalorder %s290, 15
      %s294 = scalar_select %p293, %s290, 15
      %s295 = smul.addr %s292, 16
      %s296 = sadd.s32 %s294, %s295
      %s297 = smul.addr %s296, 8
      %s298 = scalar_lea.vmem %s0, %s297
      %s299 = smul.u32 16, %s21
      %s300 = smul.u32 %s21, 8
      %s301 = ssub.s32 %s300, 1
      %p302 = scmp.gt.s32.totalorder %s301, 0
      %s303 = scalar_select %p302, %s301, 0
      %s304 = smul.u32 2, %s303
      %p305 = scmp.lt.s32.totalorder %s20, 1
      %s306 = scalar_select %p305, %s20, 1
      %p307 = scmp.lt.s32.totalorder %s304, 15
      %s308 = scalar_select %p307, %s304, 15
      %s309 = smul.addr %s306, 16
      %s310 = sadd.s32 %s308, %s309
      %s311 = smul.addr %s310, 8
      %s312 = scalar_lea.vmem %s1, %s311
      %s313 = smul.u32 %s21, 8
      %s314 = ssub.s32 %s313, 1
      %p315 = scmp.gt.s32.totalorder %s314, 0
      %s316 = scalar_select %p315, %s314, 0
      %s317 = smul.u32 2, %s316
      %s318 = smul.u32 8, %s21
      %p319 = scmp.lt.s32.totalorder %s20, 1
      %s320 = scalar_select %p319, %s20, 1
      %p321 = scmp.lt.s32.totalorder %s318, 7
      %s322 = scalar_select %p321, %s318, 7
      %s323 = smul.addr %s320, 8
      %s324 = sadd.s32 %s322, %s323
      %s325 = smul.addr %s324, 8
      %s326 = scalar_lea.vmem %s5, %s325
      %s327 = smul.u32 8, %s21
      %v328 = vld [vmem:[%s298] sm:$0xff]
      %v329 = vld [vmem:[%s298 + $0x8] sm:$0xff]
      %v330 = vld [vmem:[%s298 + $0x10] sm:$0xff]
      %v331 = vld [vmem:[%s298 + $0x18] sm:$0xff]
      %v332 = vld [vmem:[%s298 + $0x20] sm:$0xff]
      %v333 = vld [vmem:[%s298 + $0x28] sm:$0xff]
      %v334 = vld [vmem:[%s298 + $0x30] sm:$0xff]
      %v335 = vld [vmem:[%s298 + $0x38] sm:$0xff]
      %v336 = vld [vmem:[%s298 + $0x40] sm:$0xff]
      %v337 = vld [vmem:[%s298 + $0x48] sm:$0xff]
      %v338 = vld [vmem:[%s298 + $0x50] sm:$0xff]
      %v339 = vld [vmem:[%s298 + $0x58] sm:$0xff]
      %v340 = vld [vmem:[%s298 + $0x60] sm:$0xff]
      %v341 = vld [vmem:[%s298 + $0x68] sm:$0xff]
      %v342 = vld [vmem:[%s298 + $0x70] sm:$0xff]
      %v343 = vld [vmem:[%s298 + $0x78] sm:$0xff]
      %s344 = scalar_lea.vmem %s312, 8
      %v345 = vld [vmem:[%s344] sm:$0xff]
      %v346 = vld [vmem:[%s2] sm:$0xff]
      %s347 = scalar_lea.vmem %s2, 8
      %v348 = vld [vmem:[%s347] sm:$0xff]
      %vm349 = vcmask 64512
      %v351 = vsel %vm349, %v329, 0
      %v354 = vsel %vm349, %v331, 0
      %v357 = vsel %vm349, %v333, 0
      %v360 = vsel %vm349, %v335, 0
      %v363 = vsel %vm349, %v337, 0
      %v366 = vsel %vm349, %v339, 0
      %v369 = vsel %vm349, %v341, 0
      %v372 = vsel %vm349, %v343, 0
      %374 = vmatprep.subr.mxu0 0.0
      %375 = vmatpush1.msra.mxu0 %v348
      %376 = vmatprep.subr.mxu0 0.0
      %377 = vmatpush1.msra.mxu0 0.0
      %378 = vmatprep.subr.mxu0 0.0
      %379 = vmatpush1.msra.mxu0 0.0
      %380 = vmatprep.subr.mxu0 0.0
      %381 = vmatpush1.msra.mxu0 0.0
      %382 = vmatprep.subr.mxu0 0.0
      %383 = vmatpush1.msra.mxu0 0.0
      %384 = vmatprep.subr.mxu0 0.0
      %385 = vmatpush1.msra.mxu0 0.0
      %386 = vmatprep.subr.mxu0 0.0
      %387 = vmatpush1.msra.mxu0 0.0
      %388 = vmatprep.subr.mxu0 0.0
      %389 = vmatpush1.msra.mxu0 0.0
      %390 = vmatprep.subr.mxu0 0.0
      %391 = vmatpush1.msra.mxu0 0.0
      %392 = vmatprep.subr.mxu0 0.0
      %393 = vmatpush1.msra.mxu0 0.0
      %394 = vmatprep.subr.mxu0 0.0
      %395 = vmatpush1.msra.mxu0 0.0
      %396 = vmatprep.subr.mxu0 0.0
      %397 = vmatpush1.msra.mxu0 0.0
      %398 = vmatprep.subr.mxu0 0.0
      %399 = vmatpush1.msra.mxu0 0.0
      %400 = vmatprep.subr.mxu0 0.0
      %401 = vmatpush1.msra.mxu0 0.0
      %402 = vmatprep.subr.mxu0 0.0
      %403 = vmatpush1.msra.mxu0 0.0
      %404 = vmatprep.subr.mxu0 0.0
      %405 = vmatpush1.msra.mxu0 0.0
      %406 = vmatprep.subr.mxu0 0.0
      %407 = vmatpush1.msra.mxu0 0.0
      %408 = vmatprep.subr.mxu0 0.0
      %409 = vmatpush1.msra.mxu0 0.0
      %410 = vmatprep.subr.mxu0 0.0
      %411 = vmatpush1.msra.mxu0 0.0
      %412 = vmatprep.subr.mxu0 0.0
      %413 = vmatpush1.msra.mxu0 0.0
      %414 = vmatprep.subr.mxu0 0.0
      %415 = vmatpush1.msra.mxu0 0.0
      %416 = vmatprep.subr.mxu0 0.0
      %417 = vmatpush1.msra.mxu0 0.0
      %418 = vmatprep.subr.mxu0 0.0
      %419 = vmatpush1.msra.mxu0 0.0
      %420 = vmatprep.subr.mxu0 0.0
      %421 = vmatpush1.msra.mxu0 0.0
      %422 = vmatprep.subr.mxu0 0.0
      %423 = vmatpush1.msra.mxu0 0.0
      %424 = vmatprep.subr.mxu0 0.0
      %425 = vmatpush1.msra.mxu0 0.0
      %426 = vmatprep.subr.mxu0 0.0
      %427 = vmatpush1.msra.mxu0 0.0
      %428 = vmatprep.subr.mxu0 0.0
      %429 = vmatpush1.msra.mxu0 0.0
      %430 = vmatprep.subr.mxu0 0.0
      %431 = vmatpush1.msra.mxu0 0.0
      %432 = vmatprep.subr.mxu0 0.0
      %433 = vmatpush1.msra.mxu0 0.0
      %434 = vmatprep.subr.mxu0 0.0
      %435 = vmatpush1.msra.mxu0 0.0
      %436 = vmatprep.subr.mxu0 0.0
      %437 = vmatpush1.msra.mxu0 0.0
      %438 = vmatprep.mubr.f32.mxu0 0.0
      %439 = vmatmul.mubr.f32.gmra.mrb[0].mxu0 %v351
      %v440 = vpop.f32.mrb[0].mxu0
      %v441 = vadd.f32 0.0, %v440
      %v442 = vpop.f32.mrb[0].mxu0
      %443 = vmatprep.mubr.f32.mxu0 0.0
      %444 = vmatmul.mubr.f32.gmra.mrb[0].mxu0 %v354
      %v445 = vpop.f32.mrb[0].mxu0
      %v446 = vadd.f32 0.0, %v445
      %v447 = vpop.f32.mrb[0].mxu0
      %448 = vmatprep.mubr.f32.mxu0 0.0
      %449 = vmatmul.mubr.f32.gmra.mrb[0].mxu0 %v357
      %v450 = vpop.f32.mrb[0].mxu0
      %v451 = vadd.f32 0.0, %v450
      %v452 = vpop.f32.mrb[0].mxu0
      %453 = vmatprep.mubr.f32.mxu0 0.0
      %454 = vmatmul.mubr.f32.gmra.mrb[0].mxu0 %v360
      %v455 = vpop.f32.mrb[0].mxu0
      %v456 = vadd.f32 0.0, %v455
      %v457 = vpop.f32.mrb[0].mxu0
      %458 = vmatprep.mubr.f32.mxu0 0.0
      %459 = vmatmul.mubr.f32.gmra.mrb[0].mxu0 %v363
      %v460 = vpop.f32.mrb[0].mxu0
      %v461 = vadd.f32 0.0, %v460
      %v462 = vpop.f32.mrb[0].mxu0
      %463 = vmatprep.mubr.f32.mxu0 0.0
      %464 = vmatmul.mubr.f32.gmra.mrb[0].mxu0 %v366
      %v465 = vpop.f32.mrb[0].mxu0
      %v466 = vadd.f32 0.0, %v465
      %v467 = vpop.f32.mrb[0].mxu0
      %468 = vmatprep.mubr.f32.mxu0 0.0
      %469 = vmatmul.mubr.f32.gmra.mrb[0].mxu0 %v369
      %v470 = vpop.f32.mrb[0].mxu0
      %v471 = vadd.f32 0.0, %v470
      %v472 = vpop.f32.mrb[0].mxu0
      %473 = vmatprep.mubr.f32.mxu0 0.0
      %474 = vmatmul.mubr.f32.gmra.mrb[0].mxu0 %v372
      %v475 = vpop.f32.mrb[0].mxu0
      %v476 = vadd.f32 0.0, %v475
      %v477 = vpop.f32.mrb[0].mxu0
      %478 = vdwg.mxu0
      %v480 = vsel %vm349, %v328, 0
      %v483 = vsel %vm349, %v330, 0
      %v486 = vsel %vm349, %v332, 0
      %v489 = vsel %vm349, %v334, 0
      %v492 = vsel %vm349, %v336, 0
      %v495 = vsel %vm349, %v338, 0
      %v498 = vsel %vm349, %v340, 0
      %v501 = vsel %vm349, %v342, 0
      %503 = vmatprep.subr.mxu0 0.0
      %504 = vmatpush1.msra.mxu0 %v346
      %505 = vmatprep.subr.mxu0 0.0
      %506 = vmatpush1.msra.mxu0 0.0
      %507 = vmatprep.subr.mxu0 0.0
      %508 = vmatpush1.msra.mxu0 0.0
      %509 = vmatprep.subr.mxu0 0.0
      %510 = vmatpush1.msra.mxu0 0.0
      %511 = vmatprep.subr.mxu0 0.0
      %512 = vmatpush1.msra.mxu0 0.0
      %513 = vmatprep.subr.mxu0 0.0
      %514 = vmatpush1.msra.mxu0 0.0
      %515 = vmatprep.subr.mxu0 0.0
      %516 = vmatpush1.msra.mxu0 0.0
      %517 = vmatprep.subr.mxu0 0.0
      %518 = vmatpush1.msra.mxu0 0.0
      %519 = vmatprep.subr.mxu0 0.0
      %520 = vmatpush1.msra.mxu0 0.0
      %521 = vmatprep.subr.mxu0 0.0
      %522 = vmatpush1.msra.mxu0 0.0
      %523 = vmatprep.subr.mxu0 0.0
      %524 = vmatpush1.msra.mxu0 0.0
      %525 = vmatprep.subr.mxu0 0.0
      %526 = vmatpush1.msra.mxu0 0.0
      %527 = vmatprep.subr.mxu0 0.0
      %528 = vmatpush1.msra.mxu0 0.0
      %529 = vmatprep.subr.mxu0 0.0
      %530 = vmatpush1.msra.mxu0 0.0
      %531 = vmatprep.subr.mxu0 0.0
      %532 = vmatpush1.msra.mxu0 0.0
      %533 = vmatprep.subr.mxu0 0.0
      %534 = vmatpush1.msra.mxu0 0.0
      %535 = vmatprep.subr.mxu0 0.0
      %536 = vmatpush1.msra.mxu0 0.0
      %537 = vmatprep.subr.mxu0 0.0
      %538 = vmatpush1.msra.mxu0 0.0
      %539 = vmatprep.subr.mxu0 0.0
      %540 = vmatpush1.msra.mxu0 0.0
      %541 = vmatprep.subr.mxu0 0.0
      %542 = vmatpush1.msra.mxu0 0.0
      %543 = vmatprep.subr.mxu0 0.0
      %544 = vmatpush1.msra.mxu0 0.0
      %545 = vmatprep.subr.mxu0 0.0
      %546 = vmatpush1.msra.mxu0 0.0
      %547 = vmatprep.subr.mxu0 0.0
      %548 = vmatpush1.msra.mxu0 0.0
      %549 = vmatprep.subr.mxu0 0.0
      %550 = vmatpush1.msra.mxu0 0.0
      %551 = vmatprep.subr.mxu0 0.0
      %552 = vmatpush1.msra.mxu0 0.0
      %553 = vmatprep.subr.mxu0 0.0
      %554 = vmatpush1.msra.mxu0 0.0
      %555 = vmatprep.subr.mxu0 0.0
      %556 = vmatpush1.msra.mxu0 0.0
      %557 = vmatprep.subr.mxu0 0.0
      %558 = vmatpush1.msra.mxu0 0.0
      %559 = vmatprep.subr.mxu0 0.0
      %560 = vmatpush1.msra.mxu0 0.0
      %561 = vmatprep.subr.mxu0 0.0
      %562 = vmatpush1.msra.mxu0 0.0
      %563 = vmatprep.subr.mxu0 0.0
      %564 = vmatpush1.msra.mxu0 0.0
      %565 = vmatprep.subr.mxu0 0.0
      %566 = vmatpush1.msra.mxu0 0.0
      %567 = vmatprep.mubr.f32.mxu0 0.0
      %568 = vmatmul.mubr.f32.gmra.mrb[0].mxu0 %v480
      %v569 = vpop.f32.mrb[0].mxu0
      %v570 = vadd.f32 %v441, %v569
      %v571 = vpop.f32.mrb[0].mxu0
      %572 = vmatprep.mubr.f32.mxu0 0.0
      %573 = vmatmul.mubr.f32.gmra.mrb[0].mxu0 %v483
      %v574 = vpop.f32.mrb[0].mxu0
      %v575 = vadd.f32 %v446, %v574
      %v576 = vpop.f32.mrb[0].mxu0
      %577 = vmatprep.mubr.f32.mxu0 0.0
      %578 = vmatmul.mubr.f32.gmra.mrb[0].mxu0 %v486
      %v579 = vpop.f32.mrb[0].mxu0
      %v580 = vadd.f32 %v451, %v579
      %v581 = vpop.f32.mrb[0].mxu0
      %582 = vmatprep.mubr.f32.mxu0 0.0
      %583 = vmatmul.mubr.f32.gmra.mrb[0].mxu0 %v489
      %v584 = vpop.f32.mrb[0].mxu0
      %v585 = vadd.f32 %v456, %v584
      %v586 = vpop.f32.mrb[0].mxu0
      %587 = vmatprep.mubr.f32.mxu0 0.0
      %588 = vmatmul.mubr.f32.gmra.mrb[0].mxu0 %v492
      %v589 = vpop.f32.mrb[0].mxu0
      %v590 = vadd.f32 %v461, %v589
      %v591 = vpop.f32.mrb[0].mxu0
      %592 = vmatprep.mubr.f32.mxu0 0.0
      %593 = vmatmul.mubr.f32.gmra.mrb[0].mxu0 %v495
      %v594 = vpop.f32.mrb[0].mxu0
      %v595 = vadd.f32 %v466, %v594
      %v596 = vpop.f32.mrb[0].mxu0
      %597 = vmatprep.mubr.f32.mxu0 0.0
      %598 = vmatmul.mubr.f32.gmra.mrb[0].mxu0 %v498
      %v599 = vpop.f32.mrb[0].mxu0
      %v600 = vadd.f32 %v471, %v599
      %v601 = vpop.f32.mrb[0].mxu0
      %602 = vmatprep.mubr.f32.mxu0 0.0
      %603 = vmatmul.mubr.f32.gmra.mrb[0].mxu0 %v501
      %v604 = vpop.f32.mrb[0].mxu0
      %v605 = vadd.f32 %v476, %v604
      %v606 = vpop.f32.mrb[0].mxu0
      %607 = vdwg.mxu0
      %s608 = scalar_lea.vmem %s2, 16
      %v609 = vld [vmem:[%s608] sm:$0xff]
      %610 = vmatprep.subr.mxu0 0.0
      %611 = vmatpush1.msra.mxu0 %v609
      %612 = vmatprep.subr.mxu0 0.0
      %613 = vmatpush1.msra.mxu0 0.0
      %614 = vmatprep.subr.mxu0 0.0
      %615 = vmatpush1.msra.mxu0 0.0
      %616 = vmatprep.subr.mxu0 0.0
      %617 = vmatpush1.msra.mxu0 0.0
      %618 = vmatprep.subr.mxu0 0.0
      %619 = vmatpush1.msra.mxu0 0.0
      %620 = vmatprep.subr.mxu0 0.0
      %621 = vmatpush1.msra.mxu0 0.0
      %622 = vmatprep.subr.mxu0 0.0
      %623 = vmatpush1.msra.mxu0 0.0
      %624 = vmatprep.subr.mxu0 0.0
      %625 = vmatpush1.msra.mxu0 0.0
      %626 = vmatprep.subr.mxu0 0.0
      %627 = vmatpush1.msra.mxu0 0.0
      %628 = vmatprep.subr.mxu0 0.0
      %629 = vmatpush1.msra.mxu0 0.0
      %630 = vmatprep.subr.mxu0 0.0
      %631 = vmatpush1.msra.mxu0 0.0
      %632 = vmatprep.subr.mxu0 0.0
      %633 = vmatpush1.msra.mxu0 0.0
      %634 = vmatprep.subr.mxu0 0.0
      %635 = vmatpush1.msra.mxu0 0.0
      %636 = vmatprep.subr.mxu0 0.0
      %637 = vmatpush1.msra.mxu0 0.0
      %638 = vmatprep.subr.mxu0 0.0
      %639 = vmatpush1.msra.mxu0 0.0
      %640 = vmatprep.subr.mxu0 0.0
      %641 = vmatpush1.msra.mxu0 0.0
      %642 = vmatprep.subr.mxu0 0.0
      %643 = vmatpush1.msra.mxu0 0.0
      %644 = vmatprep.subr.mxu0 0.0
      %645 = vmatpush1.msra.mxu0 0.0
      %646 = vmatprep.subr.mxu0 0.0
      %647 = vmatpush1.msra.mxu0 0.0
      %648 = vmatprep.subr.mxu0 0.0
      %649 = vmatpush1.msra.mxu0 0.0
      %650 = vmatprep.subr.mxu0 0.0
      %651 = vmatpush1.msra.mxu0 0.0
      %652 = vmatprep.subr.mxu0 0.0
      %653 = vmatpush1.msra.mxu0 0.0
      %654 = vmatprep.subr.mxu0 0.0
      %655 = vmatpush1.msra.mxu0 0.0
      %656 = vmatprep.subr.mxu0 0.0
      %657 = vmatpush1.msra.mxu0 0.0
      %658 = vmatprep.subr.mxu0 0.0
      %659 = vmatpush1.msra.mxu0 0.0
      %660 = vmatprep.subr.mxu0 0.0
      %661 = vmatpush1.msra.mxu0 0.0
      %662 = vmatprep.subr.mxu0 0.0
      %663 = vmatpush1.msra.mxu0 0.0
      %664 = vmatprep.subr.mxu0 0.0
      %665 = vmatpush1.msra.mxu0 0.0
      %666 = vmatprep.subr.mxu0 0.0
      %667 = vmatpush1.msra.mxu0 0.0
      %668 = vmatprep.subr.mxu0 0.0
      %669 = vmatpush1.msra.mxu0 0.0
      %670 = vmatprep.subr.mxu0 0.0
      %671 = vmatpush1.msra.mxu0 0.0
      %672 = vmatprep.subr.mxu0 0.0
      %673 = vmatpush1.msra.mxu0 0.0
      %674 = vmatprep.mubr.f32.mxu0 0.0
      %675 = vmatmul.mubr.f32.gmra.mrb[0].mxu0 %v351
      %v676 = vpop.f32.mrb[0].mxu0
      %v677 = vadd.f32 0.0, %v676
      %v678 = vpop.f32.mrb[0].mxu0
      %679 = vmatprep.mubr.f32.mxu0 0.0
      %680 = vmatmul.mubr.f32.gmra.mrb[0].mxu0 %v354
      %v681 = vpop.f32.mrb[0].mxu0
      %v682 = vadd.f32 0.0, %v681
      %v683 = vpop.f32.mrb[0].mxu0
      %684 = vmatprep.mubr.f32.mxu0 0.0
      %685 = vmatmul.mubr.f32.gmra.mrb[0].mxu0 %v357
      %v686 = vpop.f32.mrb[0].mxu0
      %v687 = vadd.f32 0.0, %v686
      %v688 = vpop.f32.mrb[0].mxu0
      %689 = vmatprep.mubr.f32.mxu0 0.0
      %690 = vmatmul.mubr.f32.gmra.mrb[0].mxu0 %v360
      %v691 = vpop.f32.mrb[0].mxu0
      %v692 = vadd.f32 0.0, %v691
      %v693 = vpop.f32.mrb[0].mxu0
      %694 = vmatprep.mubr.f32.mxu0 0.0
      %695 = vmatmul.mubr.f32.gmra.mrb[0].mxu0 %v363
      %v696 = vpop.f32.mrb[0].mxu0
      %v697 = vadd.f32 0.0, %v696
      %v698 = vpop.f32.mrb[0].mxu0
      %699 = vmatprep.mubr.f32.mxu0 0.0
      %700 = vmatmul.mubr.f32.gmra.mrb[0].mxu0 %v366
      %v701 = vpop.f32.mrb[0].mxu0
      %v702 = vadd.f32 0.0, %v701
      %v703 = vpop.f32.mrb[0].mxu0
      %704 = vmatprep.mubr.f32.mxu0 0.0
      %705 = vmatmul.mubr.f32.gmra.mrb[0].mxu0 %v369
      %v706 = vpop.f32.mrb[0].mxu0
      %v707 = vadd.f32 0.0, %v706
      %v708 = vpop.f32.mrb[0].mxu0
      %709 = vmatprep.mubr.f32.mxu0 0.0
      %710 = vmatmul.mubr.f32.gmra.mrb[0].mxu0 %v372
      %v711 = vpop.f32.mrb[0].mxu0
      %v712 = vpop.f32.mrb[0].mxu0
      %713 = vdwg.mxu0
      %s714 = scalar_lea.vmem %s2, 24
      %v715 = vld [vmem:[%s714] sm:$0xff]
      %s716 = scalar_lea.vmem %s2, 32
      %v717 = vld [vmem:[%s716] sm:$0xff]
      %718 = vmatprep.subr.mxu0 0.0
      %719 = vmatpush1.msra.mxu0 %v717
      %720 = vmatprep.subr.mxu0 0.0
      %721 = vmatpush1.msra.mxu0 0.0
      %722 = vmatprep.subr.mxu0 0.0
      %723 = vmatpush1.msra.mxu0 0.0
      %724 = vmatprep.subr.mxu0 0.0
      %725 = vmatpush1.msra.mxu0 0.0
      %726 = vmatprep.subr.mxu0 0.0
      %727 = vmatpush1.msra.mxu0 0.0
      %728 = vmatprep.subr.mxu0 0.0
      %729 = vmatpush1.msra.mxu0 0.0
      %730 = vmatprep.subr.mxu0 0.0
      %731 = vmatpush1.msra.mxu0 0.0
      %732 = vmatprep.subr.mxu0 0.0
      %733 = vmatpush1.msra.mxu0 0.0
      %734 = vmatprep.subr.mxu0 0.0
      %735 = vmatpush1.msra.mxu0 0.0
      %736 = vmatprep.subr.mxu0 0.0
      %737 = vmatpush1.msra.mxu0 0.0
      %738 = vmatprep.subr.mxu0 0.0
      %739 = vmatpush1.msra.mxu0 0.0
      %740 = vmatprep.subr.mxu0 0.0
      %741 = vmatpush1.msra.mxu0 0.0
      %742 = vmatprep.subr.mxu0 0.0
      %743 = vmatpush1.msra.mxu0 0.0
      %744 = vmatprep.subr.mxu0 0.0
      %745 = vmatpush1.msra.mxu0 0.0
      %746 = vmatprep.subr.mxu0 0.0
      %747 = vmatpush1.msra.mxu0 0.0
      %748 = vmatprep.subr.mxu0 0.0
      %749 = vmatpush1.msra.mxu0 0.0
      %750 = vmatprep.subr.mxu0 0.0
      %751 = vmatpush1.msra.mxu0 0.0
      %752 = vmatprep.subr.mxu0 0.0
      %753 = vmatpush1.msra.mxu0 0.0
      %754 = vmatprep.subr.mxu0 0.0
      %755 = vmatpush1.msra.mxu0 0.0
      %756 = vmatprep.subr.mxu0 0.0
      %757 = vmatpush1.msra.mxu0 0.0
      %758 = vmatprep.subr.mxu0 0.0
      %759 = vmatpush1.msra.mxu0 0.0
      %760 = vmatprep.subr.mxu0 0.0
      %761 = vmatpush1.msra.mxu0 0.0
      %762 = vmatprep.subr.mxu0 0.0
      %763 = vmatpush1.msra.mxu0 0.0
      %764 = vmatprep.subr.mxu0 0.0
      %765 = vmatpush1.msra.mxu0 0.0
      %766 = vmatprep.subr.mxu0 0.0
      %767 = vmatpush1.msra.mxu0 0.0
      %768 = vmatprep.subr.mxu0 0.0
      %769 = vmatpush1.msra.mxu0 0.0
      %770 = vmatprep.subr.mxu0 0.0
      %771 = vmatpush1.msra.mxu0 0.0
      %772 = vmatprep.subr.mxu0 0.0
      %773 = vmatpush1.msra.mxu0 0.0
      %774 = vmatprep.subr.mxu0 0.0
      %775 = vmatpush1.msra.mxu0 0.0
      %776 = vmatprep.subr.mxu0 0.0
      %777 = vmatpush1.msra.mxu0 0.0
      %778 = vmatprep.subr.mxu0 0.0
      %779 = vmatpush1.msra.mxu0 0.0
      %780 = vmatprep.subr.mxu0 0.0
      %781 = vmatpush1.msra.mxu0 0.0
      %782 = vmatprep.mubr.f32.mxu0 0.0
      %783 = vmatmul.mubr.f32.gmra.mrb[0].mxu0 %v351
      %v784 = vpop.f32.mrb[0].mxu0
      %v785 = vadd.f32 0.0, %v784
      %v786 = vpop.f32.mrb[0].mxu0
      %787 = vmatprep.mubr.f32.mxu0 0.0
      %788 = vmatmul.mubr.f32.gmra.mrb[0].mxu0 %v354
      %v789 = vpop.f32.mrb[0].mxu0
      %v790 = vadd.f32 0.0, %v789
      %v791 = vpop.f32.mrb[0].mxu0
      %792 = vmatprep.mubr.f32.mxu0 0.0
      %793 = vmatmul.mubr.f32.gmra.mrb[0].mxu0 %v357
      %v794 = vpop.f32.mrb[0].mxu0
      %v795 = vadd.f32 0.0, %v794
      %v796 = vpop.f32.mrb[0].mxu0
      %797 = vmatprep.mubr.f32.mxu0 0.0
      %798 = vmatmul.mubr.f32.gmra.mrb[0].mxu0 %v360
      %v799 = vpop.f32.mrb[0].mxu0
      %v800 = vadd.f32 0.0, %v799
      %v801 = vpop.f32.mrb[0].mxu0
      %802 = vmatprep.mubr.f32.mxu0 0.0
      %803 = vmatmul.mubr.f32.gmra.mrb[0].mxu0 %v363
      %v804 = vpop.f32.mrb[0].mxu0
      %v805 = vadd.f32 0.0, %v804
      %v806 = vpop.f32.mrb[0].mxu0
      %807 = vmatprep.mubr.f32.mxu0 0.0
      %808 = vmatmul.mubr.f32.gmra.mrb[0].mxu0 %v366
      %v809 = vpop.f32.mrb[0].mxu0
      %v810 = vadd.f32 0.0, %v809
      %v811 = vpop.f32.mrb[0].mxu0
      %812 = vmatprep.mubr.f32.mxu0 0.0
      %813 = vmatmul.mubr.f32.gmra.mrb[0].mxu0 %v369
      %v814 = vpop.f32.mrb[0].mxu0
      %v815 = vadd.f32 0.0, %v814
      %v816 = vpop.f32.mrb[0].mxu0
      %817 = vmatprep.mubr.f32.mxu0 0.0
      %818 = vmatmul.mubr.f32.gmra.mrb[0].mxu0 %v372
      %v819 = vpop.f32.mrb[0].mxu0
      %v820 = vadd.f32 0.0, %v819
      %v821 = vpop.f32.mrb[0].mxu0
      %822 = vdwg.mxu0
      %823 = vmatprep.subr.mxu0 0.0
      %824 = vmatpush1.msra.mxu0 %v715
      %825 = vmatprep.subr.mxu0 0.0
      %826 = vmatpush1.msra.mxu0 0.0
      %827 = vmatprep.subr.mxu0 0.0
      %828 = vmatpush1.msra.mxu0 0.0
      %829 = vmatprep.subr.mxu0 0.0
      %830 = vmatpush1.msra.mxu0 0.0
      %831 = vmatprep.subr.mxu0 0.0
      %832 = vmatpush1.msra.mxu0 0.0
      %833 = vmatprep.subr.mxu0 0.0
      %834 = vmatpush1.msra.mxu0 0.0
      %835 = vmatprep.subr.mxu0 0.0
      %836 = vmatpush1.msra.mxu0 0.0
      %837 = vmatprep.subr.mxu0 0.0
      %838 = vmatpush1.msra.mxu0 0.0
      %839 = vmatprep.subr.mxu0 0.0
      %840 = vmatpush1.msra.mxu0 0.0
      %841 = vmatprep.subr.mxu0 0.0
      %842 = vmatpush1.msra.mxu0 0.0
      %843 = vmatprep.subr.mxu0 0.0
      %844 = vmatpush1.msra.mxu0 0.0
      %845 = vmatprep.subr.mxu0 0.0
      %846 = vmatpush1.msra.mxu0 0.0
      %847 = vmatprep.subr.mxu0 0.0
      %848 = vmatpush1.msra.mxu0 0.0
      %849 = vmatprep.subr.mxu0 0.0
      %850 = vmatpush1.msra.mxu0 0.0
      %851 = vmatprep.subr.mxu0 0.0
      %852 = vmatpush1.msra.mxu0 0.0
      %853 = vmatprep.subr.mxu0 0.0
      %854 = vmatpush1.msra.mxu0 0.0
      %855 = vmatprep.subr.mxu0 0.0
      %856 = vmatpush1.msra.mxu0 0.0
      %857 = vmatprep.subr.mxu0 0.0
      %858 = vmatpush1.msra.mxu0 0.0
      %859 = vmatprep.subr.mxu0 0.0
      %860 = vmatpush1.msra.mxu0 0.0
      %861 = vmatprep.subr.mxu0 0.0
      %862 = vmatpush1.msra.mxu0 0.0
      %863 = vmatprep.subr.mxu0 0.0
      %864 = vmatpush1.msra.mxu0 0.0
      %865 = vmatprep.subr.mxu0 0.0
      %866 = vmatpush1.msra.mxu0 0.0
      %867 = vmatprep.subr.mxu0 0.0
      %868 = vmatpush1.msra.mxu0 0.0
      %869 = vmatprep.subr.mxu0 0.0
      %870 = vmatpush1.msra.mxu0 0.0
      %871 = vmatprep.subr.mxu0 0.0
      %872 = vmatpush1.msra.mxu0 0.0
      %873 = vmatprep.subr.mxu0 0.0
      %874 = vmatpush1.msra.mxu0 0.0
      %875 = vmatprep.subr.mxu0 0.0
      %876 = vmatpush1.msra.mxu0 0.0
      %877 = vmatprep.subr.mxu0 0.0
      %878 = vmatpush1.msra.mxu0 0.0
      %879 = vmatprep.subr.mxu0 0.0
      %880 = vmatpush1.msra.mxu0 0.0
      %881 = vmatprep.subr.mxu0 0.0
      %882 = vmatpush1.msra.mxu0 0.0
      %883 = vmatprep.subr.mxu0 0.0
      %884 = vmatpush1.msra.mxu0 0.0
      %885 = vmatprep.subr.mxu0 0.0
      %886 = vmatpush1.msra.mxu0 0.0
      %887 = vmatprep.mubr.f32.mxu0 0.0
      %888 = vmatmul.mubr.f32.gmra.mrb[0].mxu0 %v480
      %v889 = vpop.f32.mrb[0].mxu0
      %v890 = vadd.f32 %v785, %v889
      %v891 = vpop.f32.mrb[0].mxu0
      %892 = vmatprep.mubr.f32.mxu0 0.0
      %893 = vmatmul.mubr.f32.gmra.mrb[0].mxu0 %v483
      %v894 = vpop.f32.mrb[0].mxu0
      %v895 = vadd.f32 %v790, %v894
      %v896 = vpop.f32.mrb[0].mxu0
      %897 = vmatprep.mubr.f32.mxu0 0.0
      %898 = vmatmul.mubr.f32.gmra.mrb[0].mxu0 %v486
      %v899 = vpop.f32.mrb[0].mxu0
      %v900 = vadd.f32 %v795, %v899
      %v901 = vpop.f32.mrb[0].mxu0
      %902 = vmatprep.mubr.f32.mxu0 0.0
      %903 = vmatmul.mubr.f32.gmra.mrb[0].mxu0 %v489
      %v904 = vpop.f32.mrb[0].mxu0
      %v905 = vadd.f32 %v800, %v904
      %v906 = vpop.f32.mrb[0].mxu0
      %907 = vmatprep.mubr.f32.mxu0 0.0
      %908 = vmatmul.mubr.f32.gmra.mrb[0].mxu0 %v492
      %v909 = vpop.f32.mrb[0].mxu0
      %v910 = vadd.f32 %v805, %v909
      %v911 = vpop.f32.mrb[0].mxu0
      %912 = vmatprep.mubr.f32.mxu0 0.0
      %913 = vmatmul.mubr.f32.gmra.mrb[0].mxu0 %v495
      %v914 = vpop.f32.mrb[0].mxu0
      %v915 = vadd.f32 %v810, %v914
      %v916 = vpop.f32.mrb[0].mxu0
      %917 = vmatprep.mubr.f32.mxu0 0.0
      %918 = vmatmul.mubr.f32.gmra.mrb[0].mxu0 %v498
      %v919 = vpop.f32.mrb[0].mxu0
      %v920 = vadd.f32 %v815, %v919
      %v921 = vpop.f32.mrb[0].mxu0
      %922 = vmatprep.mubr.f32.mxu0 0.0
      %923 = vmatmul.mubr.f32.gmra.mrb[0].mxu0 %v501
      %v924 = vpop.f32.mrb[0].mxu0
      %v925 = vadd.f32 %v820, %v924
      %v926 = vpop.f32.mrb[0].mxu0
      %927 = vdwg.mxu0
      %s928 = scalar_lea.vmem %s2, 40
      %v929 = vld [vmem:[%s928] sm:$0xff]
      %930 = vmatprep.subr.mxu0 0.0
      %931 = vmatpush1.msra.mxu0 %v929
      %932 = vmatprep.subr.mxu0 0.0
      %933 = vmatpush1.msra.mxu0 0.0
      %934 = vmatprep.subr.mxu0 0.0
      %935 = vmatpush1.msra.mxu0 0.0
      %936 = vmatprep.subr.mxu0 0.0
      %937 = vmatpush1.msra.mxu0 0.0
      %938 = vmatprep.subr.mxu0 0.0
      %939 = vmatpush1.msra.mxu0 0.0
      %940 = vmatprep.subr.mxu0 0.0
      %941 = vmatpush1.msra.mxu0 0.0
      %942 = vmatprep.subr.mxu0 0.0
      %943 = vmatpush1.msra.mxu0 0.0
      %944 = vmatprep.subr.mxu0 0.0
      %945 = vmatpush1.msra.mxu0 0.0
      %946 = vmatprep.subr.mxu0 0.0
      %947 = vmatpush1.msra.mxu0 0.0
      %948 = vmatprep.subr.mxu0 0.0
      %949 = vmatpush1.msra.mxu0 0.0
      %950 = vmatprep.subr.mxu0 0.0
      %951 = vmatpush1.msra.mxu0 0.0
      %952 = vmatprep.subr.mxu0 0.0
      %953 = vmatpush1.msra.mxu0 0.0
      %954 = vmatprep.subr.mxu0 0.0
      %955 = vmatpush1.msra.mxu0 0.0
      %956 = vmatprep.subr.mxu0 0.0
      %957 = vmatpush1.msra.mxu0 0.0
      %958 = vmatprep.subr.mxu0 0.0
      %959 = vmatpush1.msra.mxu0 0.0
      %960 = vmatprep.subr.mxu0 0.0
      %961 = vmatpush1.msra.mxu0 0.0
      %962 = vmatprep.subr.mxu0 0.0
      %963 = vmatpush1.msra.mxu0 0.0
      %964 = vmatprep.subr.mxu0 0.0
      %965 = vmatpush1.msra.mxu0 0.0
      %966 = vmatprep.subr.mxu0 0.0
      %967 = vmatpush1.msra.mxu0 0.0
      %968 = vmatprep.subr.mxu0 0.0
      %969 = vmatpush1.msra.mxu0 0.0
      %970 = vmatprep.subr.mxu0 0.0
      %971 = vmatpush1.msra.mxu0 0.0
      %972 = vmatprep.subr.mxu0 0.0
      %973 = vmatpush1.msra.mxu0 0.0
      %974 = vmatprep.subr.mxu0 0.0
      %975 = vmatpush1.msra.mxu0 0.0
      %976 = vmatprep.subr.mxu0 0.0
      %977 = vmatpush1.msra.mxu0 0.0
      %978 = vmatprep.subr.mxu0 0.0
      %979 = vmatpush1.msra.mxu0 0.0
      %980 = vmatprep.subr.mxu0 0.0
      %981 = vmatpush1.msra.mxu0 0.0
      %982 = vmatprep.subr.mxu0 0.0
      %983 = vmatpush1.msra.mxu0 0.0
      %984 = vmatprep.subr.mxu0 0.0
      %985 = vmatpush1.msra.mxu0 0.0
      %986 = vmatprep.subr.mxu0 0.0
      %987 = vmatpush1.msra.mxu0 0.0
      %988 = vmatprep.subr.mxu0 0.0
      %989 = vmatpush1.msra.mxu0 0.0
      %990 = vmatprep.subr.mxu0 0.0
      %991 = vmatpush1.msra.mxu0 0.0
      %992 = vmatprep.subr.mxu0 0.0
      %993 = vmatpush1.msra.mxu0 0.0
      %994 = vmatprep.mubr.f32.mxu0 0.0
      %995 = vmatmul.mubr.f32.gmra.mrb[0].mxu0 %v351
      %v996 = vpop.f32.mrb[0].mxu0
      %v997 = vadd.f32 0.0, %v996
      %v998 = vpop.f32.mrb[0].mxu0
      %999 = vmatprep.mubr.f32.mxu0 0.0
      %1000 = vmatmul.mubr.f32.gmra.mrb[0].mxu0 %v354
      %v1001 = vpop.f32.mrb[0].mxu0
      %v1002 = vadd.f32 0.0, %v1001
      %v1003 = vpop.f32.mrb[0].mxu0
      %1004 = vmatprep.mubr.f32.mxu0 0.0
      %1005 = vmatmul.mubr.f32.gmra.mrb[0].mxu0 %v357
      %v1006 = vpop.f32.mrb[0].mxu0
      %v1007 = vadd.f32 0.0, %v1006
      %v1008 = vpop.f32.mrb[0].mxu0
      %1009 = vmatprep.mubr.f32.mxu0 0.0
      %1010 = vmatmul.mubr.f32.gmra.mrb[0].mxu0 %v360
      %v1011 = vpop.f32.mrb[0].mxu0
      %v1012 = vadd.f32 0.0, %v1011
      %v1013 = vpop.f32.mrb[0].mxu0
      %1014 = vmatprep.mubr.f32.mxu0 0.0
      %1015 = vmatmul.mubr.f32.gmra.mrb[0].mxu0 %v363
      %v1016 = vpop.f32.mrb[0].mxu0
      %v1017 = vadd.f32 0.0, %v1016
      %v1018 = vpop.f32.mrb[0].mxu0
      %1019 = vmatprep.mubr.f32.mxu0 0.0
      %1020 = vmatmul.mubr.f32.gmra.mrb[0].mxu0 %v366
      %v1021 = vpop.f32.mrb[0].mxu0
      %v1022 = vadd.f32 0.0, %v1021
      %v1023 = vpop.f32.mrb[0].mxu0
      %1024 = vmatprep.mubr.f32.mxu0 0.0
      %1025 = vmatmul.mubr.f32.gmra.mrb[0].mxu0 %v369
      %v1026 = vpop.f32.mrb[0].mxu0
      %v1027 = vadd.f32 0.0, %v1026
      %v1028 = vpop.f32.mrb[0].mxu0
      %1029 = vmatprep.mubr.f32.mxu0 0.0
      %1030 = vmatmul.mubr.f32.gmra.mrb[0].mxu0 %v372
      %v1031 = vpop.f32.mrb[0].mxu0
      %v1032 = vpop.f32.mrb[0].mxu0
      %1033 = vdwg.mxu0
      %p1034 = scmp.gt.s32.totalorder %s21, 0
      %v1036 = vsel %vm349, %v345, 0
      %1038 = vmatprep.subr.mxu0 0.0
      %1039 = vmatpush1.msra.mxu0 %v609
      %1040 = vmatprep.subr.mxu0 0.0
      %1041 = vmatpush1.msra.mxu0 0.0
      %1042 = vmatprep.subr.mxu0 0.0
      %1043 = vmatpush1.msra.mxu0 0.0
      %1044 = vmatprep.subr.mxu0 0.0
      %1045 = vmatpush1.msra.mxu0 0.0
      %1046 = vmatprep.subr.mxu0 0.0
      %1047 = vmatpush1.msra.mxu0 0.0
      %1048 = vmatprep.subr.mxu0 0.0
      %1049 = vmatpush1.msra.mxu0 0.0
      %1050 = vmatprep.subr.mxu0 0.0
      %1051 = vmatpush1.msra.mxu0 0.0
      %1052 = vmatprep.subr.mxu0 0.0
      %1053 = vmatpush1.msra.mxu0 0.0
      %1054 = vmatprep.subr.mxu0 0.0
      %1055 = vmatpush1.msra.mxu0 0.0
      %1056 = vmatprep.subr.mxu0 0.0
      %1057 = vmatpush1.msra.mxu0 0.0
      %1058 = vmatprep.subr.mxu0 0.0
      %1059 = vmatpush1.msra.mxu0 0.0
      %1060 = vmatprep.subr.mxu0 0.0
      %1061 = vmatpush1.msra.mxu0 0.0
      %1062 = vmatprep.subr.mxu0 0.0
      %1063 = vmatpush1.msra.mxu0 0.0
      %1064 = vmatprep.subr.mxu0 0.0
      %1065 = vmatpush1.msra.mxu0 0.0
      %1066 = vmatprep.subr.mxu0 0.0
      %1067 = vmatpush1.msra.mxu0 0.0
      %1068 = vmatprep.subr.mxu0 0.0
      %1069 = vmatpush1.msra.mxu0 0.0
      %1070 = vmatprep.subr.mxu0 0.0
      %1071 = vmatpush1.msra.mxu0 0.0
      %1072 = vmatprep.subr.mxu0 0.0
      %1073 = vmatpush1.msra.mxu0 0.0
      %1074 = vmatprep.subr.mxu0 0.0
      %1075 = vmatpush1.msra.mxu0 0.0
      %1076 = vmatprep.subr.mxu0 0.0
      %1077 = vmatpush1.msra.mxu0 0.0
      %1078 = vmatprep.subr.mxu0 0.0
      %1079 = vmatpush1.msra.mxu0 0.0
      %1080 = vmatprep.subr.mxu0 0.0
      %1081 = vmatpush1.msra.mxu0 0.0
      %1082 = vmatprep.subr.mxu0 0.0
      %1083 = vmatpush1.msra.mxu0 0.0
      %1084 = vmatprep.subr.mxu0 0.0
      %1085 = vmatpush1.msra.mxu0 0.0
      %1086 = vmatprep.subr.mxu0 0.0
      %1087 = vmatpush1.msra.mxu0 0.0
      %1088 = vmatprep.subr.mxu0 0.0
      %1089 = vmatpush1.msra.mxu0 0.0
      %1090 = vmatprep.subr.mxu0 0.0
      %1091 = vmatpush1.msra.mxu0 0.0
      %1092 = vmatprep.subr.mxu0 0.0
      %1093 = vmatpush1.msra.mxu0 0.0
      %1094 = vmatprep.subr.mxu0 0.0
      %1095 = vmatpush1.msra.mxu0 0.0
      %1096 = vmatprep.subr.mxu0 0.0
      %1097 = vmatpush1.msra.mxu0 0.0
      %1098 = vmatprep.subr.mxu0 0.0
      %1099 = vmatpush1.msra.mxu0 0.0
      %1100 = vmatprep.subr.mxu0 0.0
      %1101 = vmatpush1.msra.mxu0 0.0
      %1102 = vmatprep.mubr.f32.mxu0 0.0
      %1103 = vmatmul.mubr.f32.gmra.mrb[0].mxu0 %v1036
      %v1104 = vpop.f32.mrb[0].mxu0
      %v1105 = vadd.f32 0.0, %v1104
      %v1106 = vpop.f32.mrb[0].mxu0
      %1107 = vdwg.mxu0
      %s1108 = scalar_select %p1034, 1, 0
      %v1109 = vstv %s1108
      %vm1110 = vcmp.eq.s32.totalorder %v1109, 1
      %v1111 = vsel %vm1110, %v1105, 0.0
      %1112 = vmatprep.subr.mxu0 0.0
      %1113 = vmatpush1.msra.mxu0 %v929
      %1114 = vmatprep.subr.mxu0 0.0
      %1115 = vmatpush1.msra.mxu0 0.0
      %1116 = vmatprep.subr.mxu0 0.0
      %1117 = vmatpush1.msra.mxu0 0.0
      %1118 = vmatprep.subr.mxu0 0.0
      %1119 = vmatpush1.msra.mxu0 0.0
      %1120 = vmatprep.subr.mxu0 0.0
      %1121 = vmatpush1.msra.mxu0 0.0
      %1122 = vmatprep.subr.mxu0 0.0
      %1123 = vmatpush1.msra.mxu0 0.0
      %1124 = vmatprep.subr.mxu0 0.0
      %1125 = vmatpush1.msra.mxu0 0.0
      %1126 = vmatprep.subr.mxu0 0.0
      %1127 = vmatpush1.msra.mxu0 0.0
      %1128 = vmatprep.subr.mxu0 0.0
      %1129 = vmatpush1.msra.mxu0 0.0
      %1130 = vmatprep.subr.mxu0 0.0
      %1131 = vmatpush1.msra.mxu0 0.0
      %1132 = vmatprep.subr.mxu0 0.0
      %1133 = vmatpush1.msra.mxu0 0.0
      %1134 = vmatprep.subr.mxu0 0.0
      %1135 = vmatpush1.msra.mxu0 0.0
      %1136 = vmatprep.subr.mxu0 0.0
      %1137 = vmatpush1.msra.mxu0 0.0
      %1138 = vmatprep.subr.mxu0 0.0
      %1139 = vmatpush1.msra.mxu0 0.0
      %1140 = vmatprep.subr.mxu0 0.0
      %1141 = vmatpush1.msra.mxu0 0.0
      %1142 = vmatprep.subr.mxu0 0.0
      %1143 = vmatpush1.msra.mxu0 0.0
      %1144 = vmatprep.subr.mxu0 0.0
      %1145 = vmatpush1.msra.mxu0 0.0
      %1146 = vmatprep.subr.mxu0 0.0
      %1147 = vmatpush1.msra.mxu0 0.0
      %1148 = vmatprep.subr.mxu0 0.0
      %1149 = vmatpush1.msra.mxu0 0.0
      %1150 = vmatprep.subr.mxu0 0.0
      %1151 = vmatpush1.msra.mxu0 0.0
      %1152 = vmatprep.subr.mxu0 0.0
      %1153 = vmatpush1.msra.mxu0 0.0
      %1154 = vmatprep.subr.mxu0 0.0
      %1155 = vmatpush1.msra.mxu0 0.0
      %1156 = vmatprep.subr.mxu0 0.0
      %1157 = vmatpush1.msra.mxu0 0.0
      %1158 = vmatprep.subr.mxu0 0.0
      %1159 = vmatpush1.msra.mxu0 0.0
      %1160 = vmatprep.subr.mxu0 0.0
      %1161 = vmatpush1.msra.mxu0 0.0
      %1162 = vmatprep.subr.mxu0 0.0
      %1163 = vmatpush1.msra.mxu0 0.0
      %1164 = vmatprep.subr.mxu0 0.0
      %1165 = vmatpush1.msra.mxu0 0.0
      %1166 = vmatprep.subr.mxu0 0.0
      %1167 = vmatpush1.msra.mxu0 0.0
      %1168 = vmatprep.subr.mxu0 0.0
      %1169 = vmatpush1.msra.mxu0 0.0
      %1170 = vmatprep.subr.mxu0 0.0
      %1171 = vmatpush1.msra.mxu0 0.0
      %1172 = vmatprep.subr.mxu0 0.0
      %1173 = vmatpush1.msra.mxu0 0.0
      %1174 = vmatprep.subr.mxu0 0.0
      %1175 = vmatpush1.msra.mxu0 0.0
      %1176 = vmatprep.mubr.f32.mxu0 0.0
      %1177 = vmatmul.mubr.f32.gmra.mrb[0].mxu0 %v1036
      %v1178 = vpop.f32.mrb[0].mxu0
      %v1179 = vadd.f32 0.0, %v1178
      %v1180 = vpop.f32.mrb[0].mxu0
      %1181 = vdwg.mxu0
      %v1182 = vsel %vm1110, %v1179, 0.0
      %v1183 = vadd.f32 %v890, %v1182
      %v1184 = vadd.f32 %v895, %v997
      %v1185 = vadd.f32 %v900, %v1002
      %v1186 = vadd.f32 %v905, %v1007
      %v1187 = vadd.f32 %v910, %v1012
      %v1188 = vadd.f32 %v915, %v1017
      %v1189 = vadd.f32 %v920, %v1022
      %v1190 = vadd.f32 %v925, %v1027
      %vm1199 = vcmask 1040384
      %v1200 = vrot.slane %v1183, 7
      %v1201 = vrot.slane %v1184, 7
      %v1202 = vsel %vm1199, %v1200, %v1201
      %v1203 = vrot.slane %v1185, 7
      %v1204 = vsel %vm1199, %v1201, %v1203
      %v1205 = vrot.slane %v1186, 7
      %v1206 = vsel %vm1199, %v1203, %v1205
      %v1207 = vrot.slane %v1187, 7
      %v1208 = vsel %vm1199, %v1205, %v1207
      %v1209 = vrot.slane %v1188, 7
      %v1210 = vsel %vm1199, %v1207, %v1209
      %v1211 = vrot.slane %v1189, 7
      %v1212 = vsel %vm1199, %v1209, %v1211
      %v1213 = vrot.slane %v1190, 7
      %v1214 = vsel %vm1199, %v1211, %v1213
      %v1223 = vsel %vm1199, 0.0, %v1200
      %v1224 = vld [vmem:[%s4] sm:$0xff]
      %v1225 = vld [vmem:[%s4 + $0x8] sm:$0xff]
      %v1226 = vld [vmem:[%s4 + $0x10] sm:$0xff]
      %v1227 = vld [vmem:[%s4 + $0x18] sm:$0xff]
      %v1228 = vld [vmem:[%s4 + $0x20] sm:$0xff]
      %v1229 = vld [vmem:[%s4 + $0x28] sm:$0xff]
      %v1230 = vld [vmem:[%s4 + $0x30] sm:$0xff]
      %v1231 = vld [vmem:[%s4 + $0x38] sm:$0xff]
      %1233 = vset.pattern.permute.xlu0 0
      %1234 = vperm.xlu0 %1233, %v1224
      %v1235 = vpop.permute.xlu0 %1234
      %1238 = vset.pattern.permute.xlu0 0
      %1239 = vperm.xlu0 %1238, %v1225
      %v1240 = vpop.permute.xlu0 %1239
      %1243 = vset.pattern.permute.xlu0 0
      %1244 = vperm.xlu0 %1243, %v1226
      %v1245 = vpop.permute.xlu0 %1244
      %1248 = vset.pattern.permute.xlu0 0
      %1249 = vperm.xlu0 %1248, %v1227
      %v1250 = vpop.permute.xlu0 %1249
      %1253 = vset.pattern.permute.xlu0 0
      %1254 = vperm.xlu0 %1253, %v1228
      %v1255 = vpop.permute.xlu0 %1254
      %1258 = vset.pattern.permute.xlu0 0
      %1259 = vperm.xlu0 %1258, %v1229
      %v1260 = vpop.permute.xlu0 %1259
      %1263 = vset.pattern.permute.xlu0 0
      %1264 = vperm.xlu0 %1263, %v1230
      %v1265 = vpop.permute.xlu0 %1264
      %1268 = vset.pattern.permute.xlu0 0
      %1269 = vperm.xlu0 %1268, %v1231
      %v1270 = vpop.permute.xlu0 %1269
      %v1272 = vmul.f32 %v1223, %v1235
      %v1273 = vmul.f32 %v1202, %v1240
      %v1274 = vmul.f32 %v1204, %v1245
      %v1275 = vmul.f32 %v1206, %v1250
      %v1276 = vmul.f32 %v1208, %v1255
      %v1277 = vmul.f32 %v1210, %v1260
      %v1278 = vmul.f32 %v1212, %v1265
      %v1279 = vmul.f32 %v1214, %v1270
      %v1280 = vadd.f32 %v570, %v1111
      %v1281 = vadd.f32 %v575, %v677
      %v1282 = vadd.f32 %v580, %v682
      %v1283 = vadd.f32 %v585, %v687
      %v1284 = vadd.f32 %v590, %v692
      %v1285 = vadd.f32 %v595, %v697
      %v1286 = vadd.f32 %v600, %v702
      %v1287 = vadd.f32 %v605, %v707
      %v1288 = vadd.f32 %v1280, %v1272
      %v1289 = vadd.f32 %v1281, %v1273
      %v1290 = vadd.f32 %v1282, %v1274
      %v1291 = vadd.f32 %v1283, %v1275
      %v1292 = vadd.f32 %v1284, %v1276
      %v1293 = vadd.f32 %v1285, %v1277
      %v1294 = vadd.f32 %v1286, %v1278
      %v1295 = vadd.f32 %v1287, %v1279
      %v1296 = vld [vmem:[%s3] sm:$0x1]
      %v1298 = vlaneseq
      %v1299 = vshrl.u32 %v1298, 7
      %v1300 = vsub.s32 0, %v1299
      %v1301 = vrot.slane %v1296, %v1300
      %v1303 = vadd.f32 %v1288, %v1301
      %v1304 = vadd.f32 %v1289, %v1301
      %v1305 = vadd.f32 %v1290, %v1301
      %v1306 = vadd.f32 %v1291, %v1301
      %v1307 = vadd.f32 %v1292, %v1301
      %v1308 = vadd.f32 %v1293, %v1301
      %v1309 = vadd.f32 %v1294, %v1301
      %v1310 = vadd.f32 %v1295, %v1301
      %vm1311 = vcmask 31744
      %1312 = vst.msk [vmem:[%s326] sm:$0xff] %vm1311, %v1303
      %1313 = vst.msk [vmem:[%s326 + $0x8] sm:$0xff] %vm1311, %v1304
      %1314 = vst.msk [vmem:[%s326 + $0x10] sm:$0xff] %vm1311, %v1305
      %1315 = vst.msk [vmem:[%s326 + $0x18] sm:$0xff] %vm1311, %v1306
      %1316 = vst.msk [vmem:[%s326 + $0x20] sm:$0xff] %vm1311, %v1307
      %1317 = vst.msk [vmem:[%s326 + $0x28] sm:$0xff] %vm1311, %v1308
      %1318 = vst.msk [vmem:[%s326 + $0x30] sm:$0xff] %vm1311, %v1309
      %1319 = vst.msk [vmem:[%s326 + $0x38] sm:$0xff] %vm1311, %v1310
      %s1320 = smul.u32 8, %s21
      %p1321 = scmp.lt.s32.totalorder %s20, 1
      %s1322 = scalar_select %p1321, %s20, 1
      %p1323 = scmp.lt.s32.totalorder %s1320, 7
      %s1324 = scalar_select %p1323, %s1320, 7
      %s1325 = smul.addr %s1322, 8
      %s1326 = sadd.s32 %s1324, %s1325
      %s1327 = smul.addr %s1326, 8
      %s1328 = scalar_lea.vmem %s5, %s1327
      // Predicated region
      $region41: #{tpu_custom_call.1} parent=39 // pred_check
        %p1329 = pneg %p175
      $region42: #{tpu_custom_call.1} parent=39 // pred_check_branch
        %1331 = sbr.rel (%p1329) target = $region44
      $region43: #{tpu_custom_call.1} parent=39 // pred_region
        %s1332 = smul.u32 8, %s21
      $region44: #{tpu_custom_call.1} parent=39 // pred_fallthru
        _
    $region40: #{tpu_custom_call.1} parent=5 // pred_fallthru
      _
    %p1333 = scmp.le.s32.totalorder 2, %s11
    // Predicated region
    $region45: #{tpu_custom_call.1} parent=5 // pred_check
      %p1334 = pneg %p1333
    $region46: #{tpu_custom_call.1} parent=5 // pred_check_branch
      %1336 = sbr.rel (%p1334) target = $region48
    $region47: #{tpu_custom_call.1} parent=5 // pred_region
      %s1337 = ssub.s32 %s11, 2
      // Predicated region
      $region49: #{tpu_custom_call.1} parent=47 // pred_check
        %p1338 = pneg %p181
      $region50: #{tpu_custom_call.1} parent=47 // pred_check_branch
        %1340 = sbr.rel (%p1338) target = $region52
      $region51: #{tpu_custom_call.1} parent=47 // pred_region
        %s1341 = smul.u32 8, %s23
        %p1342 = scmp.lt.s32.totalorder %s22, 1
        %s1343 = scalar_select %p1342, %s22, 1
        %p1344 = scmp.lt.s32.totalorder %s1341, 7
        %s1345 = scalar_select %p1344, %s1341, 7
        %s1346 = smul.addr %s1343, 8
        %s1347 = sadd.s32 %s1345, %s1346
        %s1348 = smul.addr %s1347, 8
        %s1349 = scalar_lea.vmem %s5, %s1348
      $region52: #{tpu_custom_call.1} parent=47 // pred_fallthru
        _
    $region48: #{tpu_custom_call.1} parent=5 // pred_fallthru
      _
  $region6: #{tpu_custom_call.1} parent=0 // loop_footer
    %s15 = sadd.s32 1, %s11
  $region7: #{tpu_custom_call.1} parent=0 // loop_footer_branch
    %10 = sbr.rel target = $region3
  $region8: #{tpu_custom_call.1} parent=0 // loop_exit
    _

</llo_original>
